<compile_context>
chip_gen: v6e
topology: v6e:2x2x1
jax: 0.10.0
libtpu: 0.0.40
codegen_flags: <defaults>
</compile_context>

<pallas_src>
import math
from functools import partial

import jax
import jax.numpy as jnp
from jax.experimental import pallas as pl
from jax.experimental.pallas import tpu as pltpu


# ------------------------------ fused kernel ---------------------------------
def _mha_fused_kernel(xq_ref, xk_ref, xv_ref, wq_ref, wk_ref, wv_ref,
                      wdp_ref, bd_ref, o_ref, *, num_heads, depth):
    """One grid step == one batch element (all S positions of that element)."""
    f32 = jnp.float32

    xq = xq_ref[0]          # (S, d_in)
    xk = xk_ref[0]
    xv = xv_ref[0]

    # ---- q/k/v projections (MXU, f32 accumulation) ---------------------------
    q = jnp.dot(xq, wq_ref[...], preferred_element_type=f32)   # (S, d_model)
    k = jnp.dot(xk, wk_ref[...], preferred_element_type=f32)
    v = jnp.dot(xv, wv_ref[...], preferred_element_type=f32)

    S = q.shape[0]
    q = q * (1.0 / math.sqrt(depth))   # fold the 1/sqrt(depth) logits scale into q

    # ---- attention: (depth x depth) softmax per position, contracting over H --
    #   logits[s, d, e] = sum_h q[s, h*depth + d] * k[s, h*depth + e]
    # Done on the VPU (broadcast outer products, unrolled over H heads) so the MXU
    # is never fed a K=num_heads contraction.
    logits = None
    for h in range(num_heads):
        qh = q[:, h * depth:(h + 1) * depth]          # (S, depth)   index d
        kh = k[:, h * depth:(h + 1) * depth]          # (S, depth)   index e
        term = qh[:, :, None] * kh[:, None, :]        # (S, depth, depth)
        logits = term if logits is None else logits + term

    m = jnp.max(logits, axis=-1, keepdims=True)
    ex = jnp.exp(logits - m)
    p = ex * pl.reciprocal(jnp.sum(ex, axis=-1, keepdims=True), approx=True)

    # ---- attention @ v, emitted directly in "concat" column-block order -------
    #   O_h[s, d] = sum_e p[s, d, e] * v[s, h*depth + e]
    # The module's concat is a C-order reinterpretation of the per-batch
    # (depth, S, H) tensor into (S, d_model).  Column block h of the matrix fed to
    # the dense layer is  M_h = reshape(O_h^T, (S, depth))  (a no-op reshape when
    # S == depth); the remaining column interleave is folded into the precomputed
    # row permutation of the dense weight (wdp_ref).
    blocks = []
    for h in range(num_heads):
        vh = v[:, h * depth:(h + 1) * depth]               # (S, depth)   index e
        oh = jnp.sum(p * vh[:, None, :], axis=-1)          # (S, depth)   [s, d]
        blocks.append(oh.T.reshape(S, depth))              # concat-aligned block
    blk = jnp.concatenate(blocks, axis=1)                  # (S, d_model)

    # ---- final dense (MXU) + bias ---------------------------------------------
    y = jnp.dot(blk.astype(wdp_ref.dtype), wdp_ref[...], preferred_element_type=f32)
    y = y + bd_ref[...].astype(f32)                        # (1, d_model) broadcast
    o_ref[0] = y.astype(o_ref.dtype)


# ------------------------------ module wrapper --------------------------------
def multi_head_attention(query, key_in, value, params, num_heads,
                         *, compute_dtype=jnp.float32):
    """Forward pass of the PyTorch MultiHeadAttention module.

    query/key_in/value : (B, S, d_input) float32.
    params             : wq/wk/wv (d_input, d_model)  [stored so that y = x @ W],
                         wd (d_model, d_model), bd (d_model,).
    Returns (B, S, 1, d_model) float32 (matching the module's output shape).
    """
    B, S, d_in = query.shape
    d_model = params["wq"].shape[1]
    assert d_model % num_heads == 0
    depth = d_model // num_heads

    # Fold the concat's C-order reinterpretation into a row permutation of the
    # dense weight:  wd_perm[h*depth + j, :] = wd[j*num_heads + h, :]
    idx = jnp.arange(d_model).reshape(depth, num_heads).T.reshape(-1)
    wd_perm = params["wd"][idx, :]

    cast = lambda a: a.astype(compute_dtype)
    bd2 = params["bd"].reshape(1, d_model).astype(jnp.float32)

    kernel = partial(_mha_fused_kernel, num_heads=num_heads, depth=depth)
    x_spec = pl.BlockSpec((1, S, d_in), lambda b: (b, 0, 0))
    w_spec = pl.BlockSpec((d_in, d_model), lambda b: (0, 0))

    out = pl.pallas_call(
        kernel,
        out_shape=jax.ShapeDtypeStruct((B, S, d_model), jnp.float32),
        grid=(B,),
        in_specs=[
            x_spec, x_spec, x_spec,                              # query / key / value
            w_spec, w_spec, w_spec,                              # wq / wk / wv
            pl.BlockSpec((d_model, d_model), lambda b: (0, 0)),  # permuted dense weight
            pl.BlockSpec((1, d_model), lambda b: (0, 0)),        # dense bias
        ],
        out_specs=pl.BlockSpec((1, S, d_model), lambda b: (b, 0, 0)),
        compiler_params=pltpu.CompilerParams(dimension_semantics=("parallel",)),
    )(cast(query), cast(key_in), cast(value),
      cast(params["wq"]), cast(params["wk"]), cast(params["wv"]),
      cast(wd_perm), bd2)

    # The concat's "-1" dim is always 1 for this module (depth*S*H == S*d_model).
    return out.reshape(B, S, 1, d_model)


# ------------------------------ pure-JAX reference ----------------------------
def reference(query, key_in, value, params, num_heads):
    B, S, _ = query.shape
    d_model = params["wq"].shape[1]
    depth = d_model // num_heads
    q = query @ params["wq"]
    k = key_in @ params["wk"]
    v = value @ params["wv"]

    def split(x):
        return jnp.swapaxes(x.reshape(B, -1, num_heads, depth), -1, -2)

    q, k, v = split(q), split(k), split(v)                        # (B, S, depth, H)
    logits = jnp.matmul(q, jnp.swapaxes(k, -1, -2)) / math.sqrt(depth)
    p = jax.nn.softmax(logits, axis=-1)
    sa = jnp.matmul(p, v)                                         # (B, S, depth, H)
    concat = jnp.transpose(sa, (0, 2, 1, 3)).reshape(B, S, -1, d_model)
    return concat @ params["wd"] + params["bd"]


# ----------------------------------- main --------------------------------------
if __name__ == "__main__":
    B, S, d_model, num_heads = 2, 8, 32, 4
    d_input = d_model  # module default (d_input=None -> d_model)

    root = jax.random.PRNGKey(0)
    ks = jax.random.split(root, 8)
    query = jax.random.normal(ks[0], (B, S, d_input), jnp.float32)
    key_in = jax.random.normal(ks[1], (B, S, d_input), jnp.float32)
    value = jax.random.normal(ks[2], (B, S, d_input), jnp.float32)

    params = dict(
        wq=0.1 * jax.random.normal(ks[3], (d_input, d_model), jnp.float32),
        wk=0.1 * jax.random.normal(ks[4], (d_input, d_model), jnp.float32),
        wv=0.1 * jax.random.normal(ks[5], (d_input, d_model), jnp.float32),
        wd=0.1 * jax.random.normal(ks[6], (d_model, d_model), jnp.float32),
        bd=0.1 * jax.random.normal(ks[7], (d_model,), jnp.float32),
    )

    ref = jax.block_until_ready(reference(query, key_in, value, params, num_heads))

    # float32 path (exact semantics; approx reciprocal only).
    out = multi_head_attention(query, key_in, value, params, num_heads)
    out = jax.block_until_ready(out)
    assert out.shape == (B, S, 1, d_model), out.shape
    err = float(jnp.max(jnp.abs(out - ref)))
    assert jnp.allclose(out, ref, rtol=2e-3, atol=2e-3), err

    # bf16 MXU-operand path (f32 accumulation) — looser tolerance.
    out_bf16 = multi_head_attention(query, key_in, value, params, num_heads,
                                    compute_dtype=jnp.bfloat16)
    out_bf16 = jax.block_until_ready(out_bf16)
    err_bf16 = float(jnp.max(jnp.abs(out_bf16 - ref)))
    assert jnp.allclose(out_bf16, ref, rtol=1.5e-1, atol=1.5e-1), err_bf16

    print("KERNEL_OK")
</pallas_src>

<mosaic_0001>
module attributes {stable_mosaic.version = 11 : i64} {
  func.func @_mha_fused_kernel(%arg0: i32, %arg1: memref<1x8x32xf32, #tpu.memory_space<vmem>>, %arg2: memref<1x8x32xf32, #tpu.memory_space<vmem>>, %arg3: memref<1x8x32xf32, #tpu.memory_space<vmem>>, %arg4: memref<32x32xf32, #tpu.memory_space<vmem>>, %arg5: memref<32x32xf32, #tpu.memory_space<vmem>>, %arg6: memref<32x32xf32, #tpu.memory_space<vmem>>, %arg7: memref<32x32xf32, #tpu.memory_space<vmem>>, %arg8: memref<1x32xf32, #tpu.memory_space<vmem>>, %arg9: memref<1x8x32xf32, #tpu.memory_space<vmem>>) attributes {dimension_semantics = [#tpu.dimension_semantics<parallel>], iteration_bounds = array<i64: 2>, scalar_prefetch = 0 : i64, scratch_operands = 0 : i64, tpu.core_type = #tpu.core_type<tc>, window_params = [{transform_indices = @transform_0, window_bounds = array<i64: 1, 8, 32>}, {transform_indices = @transform_1, window_bounds = array<i64: 1, 8, 32>}, {transform_indices = @transform_2, window_bounds = array<i64: 1, 8, 32>}, {pipeline_mode = #tpu.pipeline_mode<synchronous>, transform_indices = @transform_3, window_bounds = array<i64: 32, 32>}, {pipeline_mode = #tpu.pipeline_mode<synchronous>, transform_indices = @transform_4, window_bounds = array<i64: 32, 32>}, {pipeline_mode = #tpu.pipeline_mode<synchronous>, transform_indices = @transform_5, window_bounds = array<i64: 32, 32>}, {pipeline_mode = #tpu.pipeline_mode<synchronous>, transform_indices = @transform_6, window_bounds = array<i64: 32, 32>}, {pipeline_mode = #tpu.pipeline_mode<synchronous>, transform_indices = @transform_7, window_bounds = array<i64: 1, 32>}, {transform_indices = @transform_8, window_bounds = array<i64: 1, 8, 32>}]} {
    %c0 = arith.constant 0 : index
    %c0_0 = arith.constant 0 : index
    %c0_1 = arith.constant 0 : index
    %0 = vector.load %arg1[%c0, %c0_0, %c0_1] : memref<1x8x32xf32, #tpu.memory_space<vmem>>, vector<1x8x32xf32>
    %1 = vector.shape_cast %0 : vector<1x8x32xf32> to vector<8x32xf32>
    %c0_2 = arith.constant 0 : index
    %c0_3 = arith.constant 0 : index
    %c0_4 = arith.constant 0 : index
    %2 = vector.load %arg2[%c0_2, %c0_3, %c0_4] : memref<1x8x32xf32, #tpu.memory_space<vmem>>, vector<1x8x32xf32>
    %3 = vector.shape_cast %2 : vector<1x8x32xf32> to vector<8x32xf32>
    %c0_5 = arith.constant 0 : index
    %c0_6 = arith.constant 0 : index
    %c0_7 = arith.constant 0 : index
    %4 = vector.load %arg3[%c0_5, %c0_6, %c0_7] : memref<1x8x32xf32, #tpu.memory_space<vmem>>, vector<1x8x32xf32>
    %5 = vector.shape_cast %4 : vector<1x8x32xf32> to vector<8x32xf32>
    %c0_8 = arith.constant 0 : index
    %c0_9 = arith.constant 0 : index
    %6 = vector.load %arg4[%c0_8, %c0_9] : memref<32x32xf32, #tpu.memory_space<vmem>>, vector<32x32xf32>
    %cst = arith.constant dense<0.000000e+00> : vector<8x32xf32>
    %7 = tpu.matmul %1, %6, %cst {dimension_numbers = #tpu.dot_dimension_numbers<[1], [0], [0], [1], [0, 0, 1, 1], [], []>} : vector<8x32xf32>, vector<32x32xf32>, vector<8x32xf32> -> vector<8x32xf32>
    %c0_10 = arith.constant 0 : index
    %c0_11 = arith.constant 0 : index
    %8 = vector.load %arg5[%c0_10, %c0_11] : memref<32x32xf32, #tpu.memory_space<vmem>>, vector<32x32xf32>
    %cst_12 = arith.constant dense<0.000000e+00> : vector<8x32xf32>
    %9 = tpu.matmul %3, %8, %cst_12 {dimension_numbers = #tpu.dot_dimension_numbers<[1], [0], [0], [1], [0, 0, 1, 1], [], []>} : vector<8x32xf32>, vector<32x32xf32>, vector<8x32xf32> -> vector<8x32xf32>
    %c0_13 = arith.constant 0 : index
    %c0_14 = arith.constant 0 : index
    %10 = vector.load %arg6[%c0_13, %c0_14] : memref<32x32xf32, #tpu.memory_space<vmem>>, vector<32x32xf32>
    %cst_15 = arith.constant dense<0.000000e+00> : vector<8x32xf32>
    %11 = tpu.matmul %5, %10, %cst_15 {dimension_numbers = #tpu.dot_dimension_numbers<[1], [0], [0], [1], [0, 0, 1, 1], [], []>} : vector<8x32xf32>, vector<32x32xf32>, vector<8x32xf32> -> vector<8x32xf32>
    %cst_16 = arith.constant 0.353553385 : f32
    %12 = vector.broadcast %cst_16 : f32 to vector<8x32xf32>
    %13 = arith.mulf %7, %12 : vector<8x32xf32>
    %14 = vector.extract_strided_slice %13 {offsets = [0, 0], sizes = [8, 8], strides = [1, 1]} : vector<8x32xf32> to vector<8x8xf32>
    %15 = vector.extract_strided_slice %9 {offsets = [0, 0], sizes = [8, 8], strides = [1, 1]} : vector<8x32xf32> to vector<8x8xf32>
    %16 = vector.shape_cast %14 : vector<8x8xf32> to vector<8x8x1xf32>
    %17 = vector.shape_cast %15 : vector<8x8xf32> to vector<8x1x8xf32>
    %18 = vector.broadcast %16 : vector<8x8x1xf32> to vector<8x8x8xf32>
    %19 = vector.broadcast %17 : vector<8x1x8xf32> to vector<8x8x8xf32>
    %20 = arith.mulf %18, %19 : vector<8x8x8xf32>
    %21 = vector.extract_strided_slice %13 {offsets = [0, 8], sizes = [8, 8], strides = [1, 1]} : vector<8x32xf32> to vector<8x8xf32>
    %22 = vector.extract_strided_slice %9 {offsets = [0, 8], sizes = [8, 8], strides = [1, 1]} : vector<8x32xf32> to vector<8x8xf32>
    %23 = vector.shape_cast %21 : vector<8x8xf32> to vector<8x8x1xf32>
    %24 = vector.shape_cast %22 : vector<8x8xf32> to vector<8x1x8xf32>
    %25 = vector.broadcast %23 : vector<8x8x1xf32> to vector<8x8x8xf32>
    %26 = vector.broadcast %24 : vector<8x1x8xf32> to vector<8x8x8xf32>
    %27 = arith.mulf %25, %26 : vector<8x8x8xf32>
    %28 = arith.addf %20, %27 : vector<8x8x8xf32>
    %29 = vector.extract_strided_slice %13 {offsets = [0, 16], sizes = [8, 8], strides = [1, 1]} : vector<8x32xf32> to vector<8x8xf32>
    %30 = vector.extract_strided_slice %9 {offsets = [0, 16], sizes = [8, 8], strides = [1, 1]} : vector<8x32xf32> to vector<8x8xf32>
    %31 = vector.shape_cast %29 : vector<8x8xf32> to vector<8x8x1xf32>
    %32 = vector.shape_cast %30 : vector<8x8xf32> to vector<8x1x8xf32>
    %33 = vector.broadcast %31 : vector<8x8x1xf32> to vector<8x8x8xf32>
    %34 = vector.broadcast %32 : vector<8x1x8xf32> to vector<8x8x8xf32>
    %35 = arith.mulf %33, %34 : vector<8x8x8xf32>
    %36 = arith.addf %28, %35 : vector<8x8x8xf32>
    %37 = vector.extract_strided_slice %13 {offsets = [0, 24], sizes = [8, 8], strides = [1, 1]} : vector<8x32xf32> to vector<8x8xf32>
    %38 = vector.extract_strided_slice %9 {offsets = [0, 24], sizes = [8, 8], strides = [1, 1]} : vector<8x32xf32> to vector<8x8xf32>
    %39 = vector.shape_cast %37 : vector<8x8xf32> to vector<8x8x1xf32>
    %40 = vector.shape_cast %38 : vector<8x8xf32> to vector<8x1x8xf32>
    %41 = vector.broadcast %39 : vector<8x8x1xf32> to vector<8x8x8xf32>
    %42 = vector.broadcast %40 : vector<8x1x8xf32> to vector<8x8x8xf32>
    %43 = arith.mulf %41, %42 : vector<8x8x8xf32>
    %44 = arith.addf %36, %43 : vector<8x8x8xf32>
    %cst_17 = arith.constant dense<0xFF800000> : vector<8x8xf32>
    %45 = vector.multi_reduction <maximumf>, %44, %cst_17 [2] : vector<8x8x8xf32> to vector<8x8xf32>
    %46 = vector.shape_cast %45 : vector<8x8xf32> to vector<8x8x1xf32>
    %47 = vector.broadcast %46 : vector<8x8x1xf32> to vector<8x8x8xf32>
    %48 = arith.subf %44, %47 : vector<8x8x8xf32>
    %49 = math.exp %48 : vector<8x8x8xf32>
    %cst_18 = arith.constant dense<0.000000e+00> : vector<8x8xf32>
    %50 = vector.multi_reduction <add>, %49, %cst_18 [2] : vector<8x8x8xf32> to vector<8x8xf32>
    %51 = vector.shape_cast %50 : vector<8x8xf32> to vector<8x8x1xf32>
    %52 = tpu.reciprocal %51 {approx = true} : vector<8x8x1xf32> -> vector<8x8x1xf32>
    %53 = vector.broadcast %52 : vector<8x8x1xf32> to vector<8x8x8xf32>
    %54 = arith.mulf %49, %53 : vector<8x8x8xf32>
    %55 = vector.extract_strided_slice %11 {offsets = [0, 0], sizes = [8, 8], strides = [1, 1]} : vector<8x32xf32> to vector<8x8xf32>
    %56 = vector.shape_cast %55 : vector<8x8xf32> to vector<8x1x8xf32>
    %57 = vector.broadcast %56 : vector<8x1x8xf32> to vector<8x8x8xf32>
    %58 = arith.mulf %54, %57 : vector<8x8x8xf32>
    %cst_19 = arith.constant dense<0.000000e+00> : vector<8x8xf32>
    %59 = vector.multi_reduction <add>, %58, %cst_19 [2] : vector<8x8x8xf32> to vector<8x8xf32>
    %60 = tpu.transpose %59, [1, 0] : vector<8x8xf32> -> vector<8x8xf32>
    %61 = vector.extract_strided_slice %11 {offsets = [0, 8], sizes = [8, 8], strides = [1, 1]} : vector<8x32xf32> to vector<8x8xf32>
    %62 = vector.shape_cast %61 : vector<8x8xf32> to vector<8x1x8xf32>
    %63 = vector.broadcast %62 : vector<8x1x8xf32> to vector<8x8x8xf32>
    %64 = arith.mulf %54, %63 : vector<8x8x8xf32>
    %cst_20 = arith.constant dense<0.000000e+00> : vector<8x8xf32>
    %65 = vector.multi_reduction <add>, %64, %cst_20 [2] : vector<8x8x8xf32> to vector<8x8xf32>
    %66 = tpu.transpose %65, [1, 0] : vector<8x8xf32> -> vector<8x8xf32>
    %67 = vector.extract_strided_slice %11 {offsets = [0, 16], sizes = [8, 8], strides = [1, 1]} : vector<8x32xf32> to vector<8x8xf32>
    %68 = vector.shape_cast %67 : vector<8x8xf32> to vector<8x1x8xf32>
    %69 = vector.broadcast %68 : vector<8x1x8xf32> to vector<8x8x8xf32>
    %70 = arith.mulf %54, %69 : vector<8x8x8xf32>
    %cst_21 = arith.constant dense<0.000000e+00> : vector<8x8xf32>
    %71 = vector.multi_reduction <add>, %70, %cst_21 [2] : vector<8x8x8xf32> to vector<8x8xf32>
    %72 = tpu.transpose %71, [1, 0] : vector<8x8xf32> -> vector<8x8xf32>
    %73 = vector.extract_strided_slice %11 {offsets = [0, 24], sizes = [8, 8], strides = [1, 1]} : vector<8x32xf32> to vector<8x8xf32>
    %74 = vector.shape_cast %73 : vector<8x8xf32> to vector<8x1x8xf32>
    %75 = vector.broadcast %74 : vector<8x1x8xf32> to vector<8x8x8xf32>
    %76 = arith.mulf %54, %75 : vector<8x8x8xf32>
    %cst_22 = arith.constant dense<0.000000e+00> : vector<8x8xf32>
    %77 = vector.multi_reduction <add>, %76, %cst_22 [2] : vector<8x8x8xf32> to vector<8x8xf32>
    %78 = tpu.transpose %77, [1, 0] : vector<8x8xf32> -> vector<8x8xf32>
    %79 = tpu.concatenate %60, %66, %72, %78 in 1 : vector<8x8xf32>, vector<8x8xf32>, vector<8x8xf32>, vector<8x8xf32> -> vector<8x32xf32>
    %c0_23 = arith.constant 0 : index
    %c0_24 = arith.constant 0 : index
    %80 = vector.load %arg7[%c0_23, %c0_24] : memref<32x32xf32, #tpu.memory_space<vmem>>, vector<32x32xf32>
    %cst_25 = arith.constant dense<0.000000e+00> : vector<8x32xf32>
    %81 = tpu.matmul %79, %80, %cst_25 {dimension_numbers = #tpu.dot_dimension_numbers<[1], [0], [0], [1], [0, 0, 1, 1], [], []>} : vector<8x32xf32>, vector<32x32xf32>, vector<8x32xf32> -> vector<8x32xf32>
    %c0_26 = arith.constant 0 : index
    %c0_27 = arith.constant 0 : index
    %82 = vector.load %arg8[%c0_26, %c0_27] : memref<1x32xf32, #tpu.memory_space<vmem>>, vector<1x32xf32>
    %83 = vector.broadcast %82 : vector<1x32xf32> to vector<8x32xf32>
    %84 = arith.addf %81, %83 : vector<8x32xf32>
    %c0_28 = arith.constant 0 : index
    %c0_29 = arith.constant 0 : index
    %c0_30 = arith.constant 0 : index
    %85 = vector.load %arg9[%c0_28, %c0_29, %c0_30] : memref<1x8x32xf32, #tpu.memory_space<vmem>>, vector<1x8x32xf32>
    %86 = vector.shape_cast %85 : vector<1x8x32xf32> to vector<8x32xf32>
    %87 = vector.shape_cast %84 : vector<8x32xf32> to vector<1x8x32xf32>
    tpu.vector_store %arg9[%c0_28, %c0_29, %c0_30], %87 {strides = array<i32>} : memref<1x8x32xf32, #tpu.memory_space<vmem>>, vector<1x8x32xf32>,
    return
  }
  func.func @transform_0(%arg0: i32) -> (i32, i32, i32) {
    %c0_i32 = arith.constant 0 : i32
    %c0_i32_0 = arith.constant 0 : i32
    %c0_i32_1 = arith.constant 0 : i32
    return %arg0, %c0_i32, %c0_i32_0 : i32, i32, i32
  }
  func.func @transform_1(%arg0: i32) -> (i32, i32, i32) {
    %c0_i32 = arith.constant 0 : i32
    %c0_i32_0 = arith.constant 0 : i32
    %c0_i32_1 = arith.constant 0 : i32
    return %arg0, %c0_i32, %c0_i32_0 : i32, i32, i32
  }
  func.func @transform_2(%arg0: i32) -> (i32, i32, i32) {
    %c0_i32 = arith.constant 0 : i32
    %c0_i32_0 = arith.constant 0 : i32
    %c0_i32_1 = arith.constant 0 : i32
    return %arg0, %c0_i32, %c0_i32_0 : i32, i32, i32
  }
  func.func @transform_3(%arg0: i32) -> (i32, i32) {
    %c0_i32 = arith.constant 0 : i32
    %c0_i32_0 = arith.constant 0 : i32
    %c0_i32_1 = arith.constant 0 : i32
    return %c0_i32, %c0_i32_0 : i32, i32
  }
  func.func @transform_4(%arg0: i32) -> (i32, i32) {
    %c0_i32 = arith.constant 0 : i32
    %c0_i32_0 = arith.constant 0 : i32
    %c0_i32_1 = arith.constant 0 : i32
    return %c0_i32, %c0_i32_0 : i32, i32
  }
  func.func @transform_5(%arg0: i32) -> (i32, i32) {
    %c0_i32 = arith.constant 0 : i32
    %c0_i32_0 = arith.constant 0 : i32
    %c0_i32_1 = arith.constant 0 : i32
    return %c0_i32, %c0_i32_0 : i32, i32
  }
  func.func @transform_6(%arg0: i32) -> (i32, i32) {
    %c0_i32 = arith.constant 0 : i32
    %c0_i32_0 = arith.constant 0 : i32
    %c0_i32_1 = arith.constant 0 : i32
    return %c0_i32, %c0_i32_0 : i32, i32
  }
  func.func @transform_7(%arg0: i32) -> (i32, i32) {
    %c0_i32 = arith.constant 0 : i32
    %c0_i32_0 = arith.constant 0 : i32
    %c0_i32_1 = arith.constant 0 : i32
    return %c0_i32, %c0_i32_0 : i32, i32
  }
  func.func @transform_8(%arg0: i32) -> (i32, i32, i32) {
    %c0_i32 = arith.constant 0 : i32
    %c0_i32_0 = arith.constant 0 : i32
    %c0_i32_1 = arith.constant 0 : i32
    return %arg0, %c0_i32, %c0_i32_0 : i32, i32, i32
  }
}

</mosaic_0001>

<llo_original>
// kernel: tpu_custom_call.1
$region0: #{tpu_custom_call.1}
  #allocation0 [shape = 'u32[]', space=smem, size = 0x4, offset = 0x4, fixed_abs, tag = 'smem constant byte address 0x4 - core index']
  #allocation1 [shape = 'u32[144,128]{1,0:T(1,128)}', space=vmem, size = 0x12000, scoped, tag = 'internal scratch']
  %s0 = inlined_call_operand.hbm [shape: f32[2,8,32], index: 0, kind: input, shape index: {}]
  %s1 = inlined_call_operand.hbm [shape: f32[2,8,32], index: 1, kind: input, shape index: {}]
  %s2 = inlined_call_operand.hbm [shape: f32[2,8,32], index: 2, kind: input, shape index: {}]
  %s3 = inlined_call_operand.hbm [shape: f32[32,32], index: 3, kind: input, shape index: {}]
  %s4 = inlined_call_operand.hbm [shape: f32[32,32], index: 4, kind: input, shape index: {}]
  %s5 = inlined_call_operand.hbm [shape: f32[32,32], index: 5, kind: input, shape index: {}]
  %s6 = inlined_call_operand.hbm [shape: f32[32,32], index: 6, kind: input, shape index: {}]
  %s7 = inlined_call_operand.vmem [shape: f32[1,32], index: 7, kind: input, shape index: {}]
  %s8 = inlined_call_operand.hbm [shape: f32[2,8,32], index: 8, kind: output, shape index: {}]
  %s9 = sld [smem:[#allocation0]]
  $region93: #{tpu_custom_call.1} parent=0
    _
  %s11 = ssub.s32 1, %s9
  %s12 = scalar_select 0, %s11, %s9
  $region1: #{tpu_custom_call.1} parent=0
    #allocation2 [shape = 'u8[8192]{0}', space=vmem, size = 0x2000, scoped, tag = 'input window, operand 0']
    #allocation3 [shape = 's32[2]{0}', space=sflag, size = 0x8, scoped, tag = 'scoped memory for tpu_custom_call.1']
    #allocation4 [shape = 's32[2]{0}', space=sflag, size = 0x8, scoped, tag = 'scoped memory for tpu_custom_call.1']
    #allocation5 [shape = 'u8[8192]{0}', space=vmem, size = 0x2000, scoped, tag = 'input window, operand 1']
    #allocation6 [shape = 's32[2]{0}', space=sflag, size = 0x8, scoped, tag = 'scoped memory for tpu_custom_call.1']
    #allocation7 [shape = 'u8[8192]{0}', space=vmem, size = 0x2000, scoped, tag = 'input window, operand 2']
    #allocation8 [shape = 'u8[16384]{0}', space=vmem, size = 0x4000, scoped, tag = 'input window, operand 3, single buffered']
    #allocation9 [shape = 's32[1]{0}', space=sflag, size = 0x4, scoped, tag = 'scoped memory for tpu_custom_call.1']
    #allocation10 [shape = 'u8[16384]{0}', space=vmem, size = 0x4000, scoped, tag = 'input window, operand 4, single buffered']
    #allocation11 [shape = 'u8[16384]{0}', space=vmem, size = 0x4000, scoped, tag = 'input window, operand 5, single buffered']
    #allocation12 [shape = 's32[1]{0}', space=sflag, size = 0x4, scoped, tag = 'scoped memory for tpu_custom_call.1']
    #allocation13 [shape = 'u8[16384]{0}', space=vmem, size = 0x4000, scoped, tag = 'input window, operand 6, single buffered']
    #allocation14 [shape = 'u8[8192]{0}', space=vmem, size = 0x2000, scoped, tag = 'output window, operand 0']
    %13 = vsyncpa [#allocation3], 0
    %s14 = scalar_lea.sflag [#allocation3], 1
    %15 = vsyncpa %s14, 0
    %16 = vsyncpa [#allocation6], 0
    %s17 = scalar_lea.sflag [#allocation6], 1
    %18 = vsyncpa %s17, 0
    %19 = vsyncpa [#allocation9], 0
    %20 = vsyncpa [#allocation12], 0
    %21 = vsyncpa [#allocation4], 0
    %s22 = scalar_lea.sflag [#allocation4], 1
    %23 = vsyncpa %s22, 0
    loop: start=0, step=1, limit=4
    $region2: #{tpu_custom_call.1} parent=1 // loop_pre_header
      _
    $region3: #{tpu_custom_call.1} parent=1 // loop_header
      %s25 = sphi 0, %s29
      %p26 = scmp.ge.s32.totalorder %s25, 4
      %s35 = sphi 0, %s37
      %s38 = sphi 0, %s35
      %s39 = sphi 0, %s38
      %s55 = sphi 0, %s39
      %s61 = sphi 0, %s63
      %s64 = sphi 0, %s61
      %s65 = sphi 0, %s64
      %s81 = sphi 0, %s65
      %s87 = sphi 0, %s89
      %s90 = sphi 0, %s87
      %s91 = sphi 0, %s90
      %s107 = sphi 0, %s91
      %s111 = sphi 0, %s111
      %s113 = sphi 0, %s111
      %s114 = sphi 0, %s113
      %s128 = sphi 0, %s114
      %s132 = sphi 0, %s132
      %s134 = sphi 0, %s132
      %s135 = sphi 0, %s134
      %s149 = sphi 0, %s135
      %s153 = sphi 0, %s153
      %s155 = sphi 0, %s153
      %s156 = sphi 0, %s155
      %s170 = sphi 0, %s156
      %s174 = sphi 0, %s174
      %s176 = sphi 0, %s174
      %s177 = sphi 0, %s176
      %s191 = sphi 0, %s177
      %s195 = sphi 0, %s195
      %s197 = sphi 0, %s195
      %s198 = sphi 0, %s197
      %s212 = sphi 0, %s198
      %s218 = sphi 0, %s220
      %s221 = sphi 0, %s218
      %s222 = sphi 0, %s221
      %s238 = sphi 0, %s222
    $region4: #{tpu_custom_call.1} parent=1 // loop_header_branch
      %28 = sbr.rel (%p26) target = $region8
    $region5: #{tpu_custom_call.1} parent=1 // loop_body
      %s30 = ssub.s32 %s25, 1
      %s31 = ssub.s32 %s25, 2
      %s32 = sadd.s32 %s25, 1
      %s33 = ssub.s32 %s25, %s32
      %p34 = scmp.eq.s32.totalorder %s33, 0
      %s36 = sadd.s32 %s35, 1
      %s37 = scalar_select %p34, %s35, %s36
      %p40 = pneg %p34
      %p41 = scmp.eq.s32.totalorder %s25, 1
      %p42 = por %p40, %p41
      %p43 = scmp.ne.s32.totalorder %s35, %s38
      %p44 = scmp.eq.s32.totalorder %s25, 0
      %p45 = por %p43, %p44
      %p46 = scmp.ne.s32.totalorder %s35, %s38
      %p47 = scmp.eq.s32.totalorder %s30, 1
      %p48 = por %p46, %p47
      %p49 = scmp.ne.s32.totalorder %s38, %s39
      %p50 = scmp.eq.s32.totalorder %s30, 0
      %p51 = por %p49, %p50
      %p52 = scmp.ne.s32.totalorder %s38, %s39
      %p53 = scmp.eq.s32.totalorder %s31, 1
      %p54 = por %p52, %p53
      %p56 = scmp.ne.s32.totalorder %s39, %s55
      %p57 = scmp.eq.s32.totalorder %s31, 0
      %p58 = por %p56, %p57
      %s59 = ssub.s32 %s25, %s32
      %p60 = scmp.eq.s32.totalorder %s59, 0
      %s62 = sadd.s32 %s61, 1
      %s63 = scalar_select %p60, %s61, %s62
      %p66 = pneg %p60
      %p67 = scmp.eq.s32.totalorder %s25, 1
      %p68 = por %p66, %p67
      %p69 = scmp.ne.s32.totalorder %s61, %s64
      %p70 = scmp.eq.s32.totalorder %s25, 0
      %p71 = por %p69, %p70
      %p72 = scmp.ne.s32.totalorder %s61, %s64
      %p73 = scmp.eq.s32.totalorder %s30, 1
      %p74 = por %p72, %p73
      %p75 = scmp.ne.s32.totalorder %s64, %s65
      %p76 = scmp.eq.s32.totalorder %s30, 0
      %p77 = por %p75, %p76
      %p78 = scmp.ne.s32.totalorder %s64, %s65
      %p79 = scmp.eq.s32.totalorder %s31, 1
      %p80 = por %p78, %p79
      %p82 = scmp.ne.s32.totalorder %s65, %s81
      %p83 = scmp.eq.s32.totalorder %s31, 0
      %p84 = por %p82, %p83
      %s85 = ssub.s32 %s25, %s32
      %p86 = scmp.eq.s32.totalorder %s85, 0
      %s88 = sadd.s32 %s87, 1
      %s89 = scalar_select %p86, %s87, %s88
      %p92 = pneg %p86
      %p93 = scmp.eq.s32.totalorder %s25, 1
      %p94 = por %p92, %p93
      %p95 = scmp.ne.s32.totalorder %s87, %s90
      %p96 = scmp.eq.s32.totalorder %s25, 0
      %p97 = por %p95, %p96
      %p98 = scmp.ne.s32.totalorder %s87, %s90
      %p99 = scmp.eq.s32.totalorder %s30, 1
      %p100 = por %p98, %p99
      %p101 = scmp.ne.s32.totalorder %s90, %s91
      %p102 = scmp.eq.s32.totalorder %s30, 0
      %p103 = por %p101, %p102
      %p104 = scmp.ne.s32.totalorder %s90, %s91
      %p105 = scmp.eq.s32.totalorder %s31, 1
      %p106 = por %p104, %p105
      %p108 = scmp.ne.s32.totalorder %s91, %s107
      %p109 = scmp.eq.s32.totalorder %s31, 0
      %p110 = por %p108, %p109
      %s112 = sadd.s32 %s111, 1
      %p115 = scmp.eq.s32.totalorder %s25, 1
      %p116 = scmp.ne.s32.totalorder %s111, %s113
      %p117 = scmp.eq.s32.totalorder %s25, 0
      %p118 = por %p116, %p117
      %p119 = scmp.ne.s32.totalorder %s111, %s113
      %p120 = scmp.eq.s32.totalorder %s30, 1
      %p121 = por %p119, %p120
      %p122 = scmp.ne.s32.totalorder %s113, %s114
      %p123 = scmp.eq.s32.totalorder %s30, 0
      %p124 = por %p122, %p123
      %p125 = scmp.ne.s32.totalorder %s113, %s114
      %p126 = scmp.eq.s32.totalorder %s31, 1
      %p127 = por %p125, %p126
      %p129 = scmp.ne.s32.totalorder %s114, %s128
      %p130 = scmp.eq.s32.totalorder %s31, 0
      %p131 = por %p129, %p130
      %s133 = sadd.s32 %s132, 1
      %p136 = scmp.eq.s32.totalorder %s25, 1
      %p137 = scmp.ne.s32.totalorder %s132, %s134
      %p138 = scmp.eq.s32.totalorder %s25, 0
      %p139 = por %p137, %p138
      %p140 = scmp.ne.s32.totalorder %s132, %s134
      %p141 = scmp.eq.s32.totalorder %s30, 1
      %p142 = por %p140, %p141
      %p143 = scmp.ne.s32.totalorder %s134, %s135
      %p144 = scmp.eq.s32.totalorder %s30, 0
      %p145 = por %p143, %p144
      %p146 = scmp.ne.s32.totalorder %s134, %s135
      %p147 = scmp.eq.s32.totalorder %s31, 1
      %p148 = por %p146, %p147
      %p150 = scmp.ne.s32.totalorder %s135, %s149
      %p151 = scmp.eq.s32.totalorder %s31, 0
      %p152 = por %p150, %p151
      %s154 = sadd.s32 %s153, 1
      %p157 = scmp.eq.s32.totalorder %s25, 1
      %p158 = scmp.ne.s32.totalorder %s153, %s155
      %p159 = scmp.eq.s32.totalorder %s25, 0
      %p160 = por %p158, %p159
      %p161 = scmp.ne.s32.totalorder %s153, %s155
      %p162 = scmp.eq.s32.totalorder %s30, 1
      %p163 = por %p161, %p162
      %p164 = scmp.ne.s32.totalorder %s155, %s156
      %p165 = scmp.eq.s32.totalorder %s30, 0
      %p166 = por %p164, %p165
      %p167 = scmp.ne.s32.totalorder %s155, %s156
      %p168 = scmp.eq.s32.totalorder %s31, 1
      %p169 = por %p167, %p168
      %p171 = scmp.ne.s32.totalorder %s156, %s170
      %p172 = scmp.eq.s32.totalorder %s31, 0
      %p173 = por %p171, %p172
      %s175 = sadd.s32 %s174, 1
      %p178 = scmp.eq.s32.totalorder %s25, 1
      %p179 = scmp.ne.s32.totalorder %s174, %s176
      %p180 = scmp.eq.s32.totalorder %s25, 0
      %p181 = por %p179, %p180
      %p182 = scmp.ne.s32.totalorder %s174, %s176
      %p183 = scmp.eq.s32.totalorder %s30, 1
      %p184 = por %p182, %p183
      %p185 = scmp.ne.s32.totalorder %s176, %s177
      %p186 = scmp.eq.s32.totalorder %s30, 0
      %p187 = por %p185, %p186
      %p188 = scmp.ne.s32.totalorder %s176, %s177
      %p189 = scmp.eq.s32.totalorder %s31, 1
      %p190 = por %p188, %p189
      %p192 = scmp.ne.s32.totalorder %s177, %s191
      %p193 = scmp.eq.s32.totalorder %s31, 0
      %p194 = por %p192, %p193
      %s196 = sadd.s32 %s195, 1
      %p199 = scmp.eq.s32.totalorder %s25, 1
      %p200 = scmp.ne.s32.totalorder %s195, %s197
      %p201 = scmp.eq.s32.totalorder %s25, 0
      %p202 = por %p200, %p201
      %p203 = scmp.ne.s32.totalorder %s195, %s197
      %p204 = scmp.eq.s32.totalorder %s30, 1
      %p205 = por %p203, %p204
      %p206 = scmp.ne.s32.totalorder %s197, %s198
      %p207 = scmp.eq.s32.totalorder %s30, 0
      %p208 = por %p206, %p207
      %p209 = scmp.ne.s32.totalorder %s197, %s198
      %p210 = scmp.eq.s32.totalorder %s31, 1
      %p211 = por %p209, %p210
      %p213 = scmp.ne.s32.totalorder %s198, %s212
      %p214 = scmp.eq.s32.totalorder %s31, 0
      %p215 = por %p213, %p214
      %s216 = ssub.s32 %s25, %s32
      %p217 = scmp.eq.s32.totalorder %s216, 0
      %s219 = sadd.s32 %s218, 1
      %s220 = scalar_select %p217, %s218, %s219
      %p223 = pneg %p217
      %p224 = scmp.eq.s32.totalorder %s25, 1
      %p225 = por %p223, %p224
      %p226 = scmp.ne.s32.totalorder %s218, %s221
      %p227 = scmp.eq.s32.totalorder %s25, 0
      %p228 = por %p226, %p227
      %p229 = scmp.ne.s32.totalorder %s218, %s221
      %p230 = scmp.eq.s32.totalorder %s30, 1
      %p231 = por %p229, %p230
      %p232 = scmp.ne.s32.totalorder %s221, %s222
      %p233 = scmp.eq.s32.totalorder %s30, 0
      %p234 = por %p232, %p233
      %p235 = scmp.ne.s32.totalorder %s221, %s222
      %p236 = scmp.eq.s32.totalorder %s31, 1
      %p237 = por %p235, %p236
      %p239 = scmp.ne.s32.totalorder %s222, %s238
      %p240 = scmp.eq.s32.totalorder %s31, 0
      %p241 = por %p239, %p240
      %p242 = scmp.le.s32.totalorder 1, %s25
      %p243 = scmp.lt.s32.totalorder %s25, 3
      %p244 = pnand %p242, %p243
      %p245 = pneg %p244
      // Predicated region
      $region9: #{tpu_custom_call.1} parent=5 // pred_check
        _
      $region10: #{tpu_custom_call.1} parent=5 // pred_check_branch
        %247 = sbr.rel (%p244) target = $region12
      $region11: #{tpu_custom_call.1} parent=5 // pred_region
        %s248 = ssub.s32 %s25, 1
        // Predicated region
        $region13: #{tpu_custom_call.1} parent=11 // pred_check
          %p249 = pneg %p124
        $region14: #{tpu_custom_call.1} parent=11 // pred_check_branch
          %251 = sbr.rel (%p249) target = $region16
        $region15: #{tpu_custom_call.1} parent=11 // pred_region
          %s253 = ssub.s32 512, 512
          %254 = vsyncadd [#allocation9], %s253
          %s255 = sshll.u32 [#allocation8], 4
          %s256 = int_to_ptr.vmem [resolvable:$true] %s255
          %261 = dma.hbm_to_vmem [thread:$0]  %s3, 512, %s256, [#allocation9], 128, 128, 8
        $region16: #{tpu_custom_call.1} parent=11 // pred_fallthru
          _
        // Predicated region
        $region17: #{tpu_custom_call.1} parent=11 // pred_check
          %p262 = pneg %p145
        $region18: #{tpu_custom_call.1} parent=11 // pred_check_branch
          %264 = sbr.rel (%p262) target = $region20
        $region19: #{tpu_custom_call.1} parent=11 // pred_region
          %s266 = ssub.s32 512, 512
          %267 = vsyncadd [#allocation9], %s266
          %s268 = sshll.u32 [#allocation10], 4
          %s269 = int_to_ptr.vmem [resolvable:$true] %s268
          %274 = dma.hbm_to_vmem [thread:$0]  %s4, 512, %s269, [#allocation9], 128, 128, 8
        $region20: #{tpu_custom_call.1} parent=11 // pred_fallthru
          _
        // Predicated region
        $region21: #{tpu_custom_call.1} parent=11 // pred_check
          %p275 = pneg %p166
        $region22: #{tpu_custom_call.1} parent=11 // pred_check_branch
          %277 = sbr.rel (%p275) target = $region24
        $region23: #{tpu_custom_call.1} parent=11 // pred_region
          %s279 = ssub.s32 512, 512
          %280 = vsyncadd [#allocation12], %s279
          %s281 = sshll.u32 [#allocation11], 4
          %s282 = int_to_ptr.vmem [resolvable:$true] %s281
          %287 = dma.hbm_to_vmem [thread:$0]  %s5, 512, %s282, [#allocation12], 128, 128, 8
        $region24: #{tpu_custom_call.1} parent=11 // pred_fallthru
          _
        // Predicated region
        $region25: #{tpu_custom_call.1} parent=11 // pred_check
          %p288 = pneg %p187
        $region26: #{tpu_custom_call.1} parent=11 // pred_check_branch
          %290 = sbr.rel (%p288) target = $region28
        $region27: #{tpu_custom_call.1} parent=11 // pred_region
          %s292 = ssub.s32 512, 512
          %293 = vsyncadd [#allocation12], %s292
          %s294 = sshll.u32 [#allocation13], 4
          %s295 = int_to_ptr.vmem [resolvable:$true] %s294
          %300 = dma.hbm_to_vmem [thread:$0]  %s6, 512, %s295, [#allocation12], 128, 128, 8
        $region28: #{tpu_custom_call.1} parent=11 // pred_fallthru
          _
        // Predicated region
        $region29: #{tpu_custom_call.1} parent=11 // pred_check
          %p301 = pneg %p208
        $region30: #{tpu_custom_call.1} parent=11 // pred_check_branch
          %303 = sbr.rel (%p301) target = $region32
        $region31: #{tpu_custom_call.1} parent=11 // pred_region
          _
        $region32: #{tpu_custom_call.1} parent=11 // pred_fallthru
          _
      $region12: #{tpu_custom_call.1} parent=5 // pred_fallthru
        _
      %p304 = scmp.lt.s32.totalorder %s25, 2
      // Predicated region
      $region33: #{tpu_custom_call.1} parent=5 // pred_check
        %p305 = pneg %p304
      $region34: #{tpu_custom_call.1} parent=5 // pred_check_branch
        %307 = sbr.rel (%p305) target = $region36
      $region35: #{tpu_custom_call.1} parent=5 // pred_region
        // Predicated region
        $region37: #{tpu_custom_call.1} parent=35 // pred_check
          %p308 = pneg %p45
        $region38: #{tpu_custom_call.1} parent=35 // pred_check_branch
          %310 = sbr.rel (%p308) target = $region40
        $region39: #{tpu_custom_call.1} parent=35 // pred_region
          %s311 = sand.u32 %s35, 1
          %s312 = scalar_lea.sflag [#allocation3], %s311
          %s313 = sand.u32 %s35, 1
          %s314 = smul.addr %s313, 8
          %s315 = scalar_lea.vmem [#allocation2], %s314
          %s317 = ssub.s32 128, 128
          %318 = vsyncadd %s312, %s317
          %s319 = smul.addr %s25, 128
          %s320 = scalar_lea.hbm %s0, %s319
          %s322 = sshll.u32 %s315, 4
          %s323 = int_to_ptr.vmem [resolvable:$true] %s322
          %325 = dma.hbm_to_vmem [thread:$0]  %s320, 128, %s323, %s312
        $region40: #{tpu_custom_call.1} parent=35 // pred_fallthru
          _
        // Predicated region
        $region41: #{tpu_custom_call.1} parent=35 // pred_check
          %p326 = pneg %p71
        $region42: #{tpu_custom_call.1} parent=35 // pred_check_branch
          %328 = sbr.rel (%p326) target = $region44
        $region43: #{tpu_custom_call.1} parent=35 // pred_region
          %s329 = sand.u32 %s25, 1
          %s330 = scalar_lea.sflag [#allocation6], %s329
          %s331 = sand.u32 %s61, 1
          %s332 = smul.addr %s331, 8
          %s333 = scalar_lea.vmem [#allocation5], %s332
          %s335 = ssub.s32 128, 128
          %336 = vsyncadd %s330, %s335
          %s337 = smul.addr %s25, 128
          %s338 = scalar_lea.hbm %s1, %s337
          %s340 = sshll.u32 %s333, 4
          %s341 = int_to_ptr.vmem [resolvable:$true] %s340
          %343 = dma.hbm_to_vmem [thread:$0]  %s338, 128, %s341, %s330
        $region44: #{tpu_custom_call.1} parent=35 // pred_fallthru
          _
        // Predicated region
        $region45: #{tpu_custom_call.1} parent=35 // pred_check
          %p344 = pneg %p97
        $region46: #{tpu_custom_call.1} parent=35 // pred_check_branch
          %346 = sbr.rel (%p344) target = $region48
        $region47: #{tpu_custom_call.1} parent=35 // pred_region
          %s347 = sand.u32 %s25, 1
          %s348 = scalar_lea.sflag [#allocation6], %s347
          %s349 = sand.u32 %s87, 1
          %s350 = smul.addr %s349, 8
          %s351 = scalar_lea.vmem [#allocation7], %s350
          %s353 = ssub.s32 128, 128
          %354 = vsyncadd %s348, %s353
          %s355 = smul.addr %s25, 128
          %s356 = scalar_lea.hbm %s2, %s355
          %s358 = sshll.u32 %s351, 4
          %s359 = int_to_ptr.vmem [resolvable:$true] %s358
          %361 = dma.hbm_to_vmem [thread:$0]  %s356, 128, %s359, %s348
        $region48: #{tpu_custom_call.1} parent=35 // pred_fallthru
          _
      $region36: #{tpu_custom_call.1} parent=5 // pred_fallthru
        _
      %p362 = scmp.le.s32.totalorder 1, %s25
      %p363 = scmp.lt.s32.totalorder %s25, 3
      %p364 = pnand %p362, %p363
      %p365 = pneg %p364
      // Predicated region
      $region49: #{tpu_custom_call.1} parent=5 // pred_check
        _
      $region50: #{tpu_custom_call.1} parent=5 // pred_check_branch
        %367 = sbr.rel (%p364) target = $region52
      $region51: #{tpu_custom_call.1} parent=5 // pred_region
        %s368 = ssub.s32 %s25, 1
        %s369 = sand.u32 %s38, 1
        %s370 = scalar_lea.sflag [#allocation3], %s369
        %s371 = sand.u32 %s38, 1
        %s372 = smul.addr %s371, 8
        %s373 = scalar_lea.vmem [#allocation2], %s372
        // Predicated region
        $region53: #{tpu_custom_call.1} parent=51 // pred_check
          %p374 = pneg %p51
        $region54: #{tpu_custom_call.1} parent=51 // pred_check_branch
          %376 = sbr.rel (%p374) target = $region56
        $region55: #{tpu_custom_call.1} parent=51 // pred_region
          %377 = dma.done %s370, 128
        $region56: #{tpu_custom_call.1} parent=51 // pred_fallthru
          _
        %s378 = sand.u32 %s30, 1
        %s379 = scalar_lea.sflag [#allocation6], %s378
        %s380 = sand.u32 %s64, 1
        %s381 = smul.addr %s380, 8
        %s382 = scalar_lea.vmem [#allocation5], %s381
        // Predicated region
        $region57: #{tpu_custom_call.1} parent=51 // pred_check
          %p383 = pneg %p77
        $region58: #{tpu_custom_call.1} parent=51 // pred_check_branch
          %385 = sbr.rel (%p383) target = $region60
        $region59: #{tpu_custom_call.1} parent=51 // pred_region
          %386 = dma.done %s379, 128
        $region60: #{tpu_custom_call.1} parent=51 // pred_fallthru
          _
        %s387 = sand.u32 %s30, 1
        %s388 = scalar_lea.sflag [#allocation6], %s387
        %s389 = sand.u32 %s90, 1
        %s390 = smul.addr %s389, 8
        %s391 = scalar_lea.vmem [#allocation7], %s390
        // Predicated region
        $region61: #{tpu_custom_call.1} parent=51 // pred_check
          %p392 = pneg %p103
        $region62: #{tpu_custom_call.1} parent=51 // pred_check_branch
          %394 = sbr.rel (%p392) target = $region64
        $region63: #{tpu_custom_call.1} parent=51 // pred_region
          %395 = dma.done %s388, 128
        $region64: #{tpu_custom_call.1} parent=51 // pred_fallthru
          _
        // Predicated region
        $region65: #{tpu_custom_call.1} parent=51 // pred_check
          %p396 = pneg %p124
        $region66: #{tpu_custom_call.1} parent=51 // pred_check_branch
          %398 = sbr.rel (%p396) target = $region68
        $region67: #{tpu_custom_call.1} parent=51 // pred_region
          %399 = dma.done [#allocation9], 512
        $region68: #{tpu_custom_call.1} parent=51 // pred_fallthru
          _
        // Predicated region
        $region69: #{tpu_custom_call.1} parent=51 // pred_check
          %p400 = pneg %p145
        $region70: #{tpu_custom_call.1} parent=51 // pred_check_branch
          %402 = sbr.rel (%p400) target = $region72
        $region71: #{tpu_custom_call.1} parent=51 // pred_region
          %403 = dma.done [#allocation9], 512
        $region72: #{tpu_custom_call.1} parent=51 // pred_fallthru
          _
        // Predicated region
        $region73: #{tpu_custom_call.1} parent=51 // pred_check
          %p404 = pneg %p166
        $region74: #{tpu_custom_call.1} parent=51 // pred_check_branch
          %406 = sbr.rel (%p404) target = $region76
        $region75: #{tpu_custom_call.1} parent=51 // pred_region
          %407 = dma.done [#allocation12], 512
        $region76: #{tpu_custom_call.1} parent=51 // pred_fallthru
          _
        // Predicated region
        $region77: #{tpu_custom_call.1} parent=51 // pred_check
          %p408 = pneg %p187
        $region78: #{tpu_custom_call.1} parent=51 // pred_check_branch
          %410 = sbr.rel (%p408) target = $region80
        $region79: #{tpu_custom_call.1} parent=51 // pred_region
          %411 = dma.done [#allocation12], 512
        $region80: #{tpu_custom_call.1} parent=51 // pred_fallthru
          _
        %s412 = sand.u32 %s38, 1
        %s413 = scalar_lea.sflag [#allocation3], %s412
        %s414 = sand.u32 %s38, 1
        %s415 = smul.addr %s414, 8
        %s416 = scalar_lea.vmem [#allocation2], %s415
        %p417 = pneg %p51
        %p418 = pneg %p48
        %s419 = sand.u32 %s30, 1
        %s420 = scalar_lea.sflag [#allocation6], %s419
        %s421 = sand.u32 %s64, 1
        %s422 = smul.addr %s421, 8
        %s423 = scalar_lea.vmem [#allocation5], %s422
        %p424 = pneg %p77
        %p425 = pneg %p74
        %s426 = sand.u32 %s30, 1
        %s427 = scalar_lea.sflag [#allocation6], %s426
        %s428 = sand.u32 %s90, 1
        %s429 = smul.addr %s428, 8
        %s430 = scalar_lea.vmem [#allocation7], %s429
        %p431 = pneg %p103
        %p432 = pneg %p100
        %p433 = pneg %p124
        %p434 = pneg %p121
        %p435 = pneg %p145
        %p436 = pneg %p142
        %p437 = pneg %p166
        %p438 = pneg %p163
        %p439 = pneg %p187
        %p440 = pneg %p184
        %p441 = pneg %p208
        %p442 = pneg %p205
        %p443 = pneg %p234
        %p444 = pneg %p231
        %s445 = sand.u32 %s221, 1
        %s446 = scalar_lea.sflag [#allocation4], %s445
        %s447 = sand.u32 %s221, 1
        %s448 = smul.addr %s447, 8
        %s449 = scalar_lea.vmem [#allocation14], %s448
        %v450 = vld [vmem:[%s373] sm:$0xff]
        %v451 = vld [vmem:[%s382] sm:$0xff]
        %v452 = vld [vmem:[%s391] sm:$0xff]
        %v453 = vld [vmem:[#allocation8] sm:$0xff]
        %v454 = vld [vmem:[#allocation8 + $0x8] sm:$0xff]
        %v455 = vld [vmem:[#allocation8 + $0x10] sm:$0xff]
        %v456 = vld [vmem:[#allocation8 + $0x18] sm:$0xff]
        %vm457 = vcmask 261120
        %v459 = vsel %vm457, %v450, 0
        %461 = vmatprep.subr.mxu0 0.0
        %462 = vmatpush1.msra.mxu0 0.0
        %463 = vmatprep.subr.mxu0 0.0
        %464 = vmatpush1.msra.mxu0 0.0
        %465 = vmatprep.subr.mxu0 0.0
        %466 = vmatpush1.msra.mxu0 0.0
        %467 = vmatprep.subr.mxu0 0.0
        %468 = vmatpush1.msra.mxu0 0.0
        %469 = vmatprep.subr.mxu0 0.0
        %470 = vmatpush1.msra.mxu0 0.0
        %471 = vmatprep.subr.mxu0 0.0
        %472 = vmatpush1.msra.mxu0 0.0
        %473 = vmatprep.subr.mxu0 0.0
        %474 = vmatpush1.msra.mxu0 0.0
        %475 = vmatprep.subr.mxu0 0.0
        %476 = vmatpush1.msra.mxu0 0.0
        %477 = vmatprep.subr.mxu0 0.0
        %478 = vmatpush1.msra.mxu0 0.0
        %479 = vmatprep.subr.mxu0 0.0
        %480 = vmatpush1.msra.mxu0 0.0
        %481 = vmatprep.subr.mxu0 0.0
        %482 = vmatpush1.msra.mxu0 0.0
        %483 = vmatprep.subr.mxu0 0.0
        %484 = vmatpush1.msra.mxu0 0.0
        %485 = vmatprep.subr.mxu0 0.0
        %486 = vmatpush1.msra.mxu0 %v456
        %487 = vmatprep.subr.mxu0 0.0
        %488 = vmatpush1.msra.mxu0 %v455
        %489 = vmatprep.subr.mxu0 0.0
        %490 = vmatpush1.msra.mxu0 %v454
        %491 = vmatprep.subr.mxu0 0.0
        %492 = vmatpush1.msra.mxu0 %v453
        %493 = vmatprep.subr.mxu0 0.0
        %494 = vmatpush2.msra.mxu0 0.0
        %495 = vmatprep.subr.mxu0 0.0
        %496 = vmatpush2.msra.mxu0 0.0
        %497 = vmatprep.subr.mxu0 0.0
        %498 = vmatpush2.msra.mxu0 0.0
        %499 = vmatprep.subr.mxu0 0.0
        %500 = vmatpush2.msra.mxu0 0.0
        %501 = vmatprep.subr.mxu0 0.0
        %502 = vmatpush2.msra.mxu0 0.0
        %503 = vmatprep.subr.mxu0 0.0
        %504 = vmatpush2.msra.mxu0 0.0
        %505 = vmatprep.subr.mxu0 0.0
        %506 = vmatpush2.msra.mxu0 0.0
        %507 = vmatprep.subr.mxu0 0.0
        %508 = vmatpush2.msra.mxu0 0.0
        %509 = vmatprep.subr.mxu0 0.0
        %510 = vmatpush2.msra.mxu0 0.0
        %511 = vmatprep.subr.mxu0 0.0
        %512 = vmatpush2.msra.mxu0 0.0
        %513 = vmatprep.subr.mxu0 0.0
        %514 = vmatpush2.msra.mxu0 0.0
        %515 = vmatprep.subr.mxu0 0.0
        %516 = vmatpush2.msra.mxu0 0.0
        %517 = vmatprep.subr.mxu0 0.0
        %518 = vmatpush2.msra.mxu0 0.0
        %519 = vmatprep.subr.mxu0 0.0
        %520 = vmatpush2.msra.mxu0 0.0
        %521 = vmatprep.subr.mxu0 0.0
        %522 = vmatpush2.msra.mxu0 0.0
        %523 = vmatprep.subr.mxu0 0.0
        %524 = vmatpush2.msra.mxu0 0.0
        %525 = vmatprep.mubr.f32.mxu0 0.0
        %526 = vmatmul.mubr.f32.gmra.mxu0 %v459
        %v527 = vpop.f32.mrf.mxu0
        %v528 = vadd.f32 0.0, %v527
        %v529 = vpop.f32.mrf.mxu0
        %530 = vdwg.mxu0
        %v531 = vld [vmem:[#allocation10] sm:$0xff]
        %v532 = vld [vmem:[#allocation10 + $0x8] sm:$0xff]
        %v533 = vld [vmem:[#allocation10 + $0x10] sm:$0xff]
        %v534 = vld [vmem:[#allocation10 + $0x18] sm:$0xff]
        %v536 = vsel %vm457, %v451, 0
        %538 = vmatprep.subr.mxu0 0.0
        %539 = vmatpush1.msra.mxu0 0.0
        %540 = vmatprep.subr.mxu0 0.0
        %541 = vmatpush1.msra.mxu0 0.0
        %542 = vmatprep.subr.mxu0 0.0
        %543 = vmatpush1.msra.mxu0 0.0
        %544 = vmatprep.subr.mxu0 0.0
        %545 = vmatpush1.msra.mxu0 0.0
        %546 = vmatprep.subr.mxu0 0.0
        %547 = vmatpush1.msra.mxu0 0.0
        %548 = vmatprep.subr.mxu0 0.0
        %549 = vmatpush1.msra.mxu0 0.0
        %550 = vmatprep.subr.mxu0 0.0
        %551 = vmatpush1.msra.mxu0 0.0
        %552 = vmatprep.subr.mxu0 0.0
        %553 = vmatpush1.msra.mxu0 0.0
        %554 = vmatprep.subr.mxu0 0.0
        %555 = vmatpush1.msra.mxu0 0.0
        %556 = vmatprep.subr.mxu0 0.0
        %557 = vmatpush1.msra.mxu0 0.0
        %558 = vmatprep.subr.mxu0 0.0
        %559 = vmatpush1.msra.mxu0 0.0
        %560 = vmatprep.subr.mxu0 0.0
        %561 = vmatpush1.msra.mxu0 0.0
        %562 = vmatprep.subr.mxu0 0.0
        %563 = vmatpush1.msra.mxu0 %v534
        %564 = vmatprep.subr.mxu0 0.0
        %565 = vmatpush1.msra.mxu0 %v533
        %566 = vmatprep.subr.mxu0 0.0
        %567 = vmatpush1.msra.mxu0 %v532
        %568 = vmatprep.subr.mxu0 0.0
        %569 = vmatpush1.msra.mxu0 %v531
        %570 = vmatprep.subr.mxu0 0.0
        %571 = vmatpush2.msra.mxu0 0.0
        %572 = vmatprep.subr.mxu0 0.0
        %573 = vmatpush2.msra.mxu0 0.0
        %574 = vmatprep.subr.mxu0 0.0
        %575 = vmatpush2.msra.mxu0 0.0
        %576 = vmatprep.subr.mxu0 0.0
        %577 = vmatpush2.msra.mxu0 0.0
        %578 = vmatprep.subr.mxu0 0.0
        %579 = vmatpush2.msra.mxu0 0.0
        %580 = vmatprep.subr.mxu0 0.0
        %581 = vmatpush2.msra.mxu0 0.0
        %582 = vmatprep.subr.mxu0 0.0
        %583 = vmatpush2.msra.mxu0 0.0
        %584 = vmatprep.subr.mxu0 0.0
        %585 = vmatpush2.msra.mxu0 0.0
        %586 = vmatprep.subr.mxu0 0.0
        %587 = vmatpush2.msra.mxu0 0.0
        %588 = vmatprep.subr.mxu0 0.0
        %589 = vmatpush2.msra.mxu0 0.0
        %590 = vmatprep.subr.mxu0 0.0
        %591 = vmatpush2.msra.mxu0 0.0
        %592 = vmatprep.subr.mxu0 0.0
        %593 = vmatpush2.msra.mxu0 0.0
        %594 = vmatprep.subr.mxu0 0.0
        %595 = vmatpush2.msra.mxu0 0.0
        %596 = vmatprep.subr.mxu0 0.0
        %597 = vmatpush2.msra.mxu0 0.0
        %598 = vmatprep.subr.mxu0 0.0
        %599 = vmatpush2.msra.mxu0 0.0
        %600 = vmatprep.subr.mxu0 0.0
        %601 = vmatpush2.msra.mxu0 0.0
        %602 = vmatprep.mubr.f32.mxu0 0.0
        %603 = vmatmul.mubr.f32.gmra.mxu0 %v536
        %v604 = vpop.f32.mrf.mxu0
        %v605 = vadd.f32 0.0, %v604
        %v606 = vpop.f32.mrf.mxu0
        %607 = vdwg.mxu0
        %v608 = vld [vmem:[#allocation11] sm:$0xff]
        %v609 = vld [vmem:[#allocation11 + $0x8] sm:$0xff]
        %v610 = vld [vmem:[#allocation11 + $0x10] sm:$0xff]
        %v611 = vld [vmem:[#allocation11 + $0x18] sm:$0xff]
        %v613 = vsel %vm457, %v452, 0
        %615 = vmatprep.subr.mxu0 0.0
        %616 = vmatpush1.msra.mxu0 0.0
        %617 = vmatprep.subr.mxu0 0.0
        %618 = vmatpush1.msra.mxu0 0.0
        %619 = vmatprep.subr.mxu0 0.0
        %620 = vmatpush1.msra.mxu0 0.0
        %621 = vmatprep.subr.mxu0 0.0
        %622 = vmatpush1.msra.mxu0 0.0
        %623 = vmatprep.subr.mxu0 0.0
        %624 = vmatpush1.msra.mxu0 0.0
        %625 = vmatprep.subr.mxu0 0.0
        %626 = vmatpush1.msra.mxu0 0.0
        %627 = vmatprep.subr.mxu0 0.0
        %628 = vmatpush1.msra.mxu0 0.0
        %629 = vmatprep.subr.mxu0 0.0
        %630 = vmatpush1.msra.mxu0 0.0
        %631 = vmatprep.subr.mxu0 0.0
        %632 = vmatpush1.msra.mxu0 0.0
        %633 = vmatprep.subr.mxu0 0.0
        %634 = vmatpush1.msra.mxu0 0.0
        %635 = vmatprep.subr.mxu0 0.0
        %636 = vmatpush1.msra.mxu0 0.0
        %637 = vmatprep.subr.mxu0 0.0
        %638 = vmatpush1.msra.mxu0 0.0
        %639 = vmatprep.subr.mxu0 0.0
        %640 = vmatpush1.msra.mxu0 %v611
        %641 = vmatprep.subr.mxu0 0.0
        %642 = vmatpush1.msra.mxu0 %v610
        %643 = vmatprep.subr.mxu0 0.0
        %644 = vmatpush1.msra.mxu0 %v609
        %645 = vmatprep.subr.mxu0 0.0
        %646 = vmatpush1.msra.mxu0 %v608
        %647 = vmatprep.subr.mxu0 0.0
        %648 = vmatpush2.msra.mxu0 0.0
        %649 = vmatprep.subr.mxu0 0.0
        %650 = vmatpush2.msra.mxu0 0.0
        %651 = vmatprep.subr.mxu0 0.0
        %652 = vmatpush2.msra.mxu0 0.0
        %653 = vmatprep.subr.mxu0 0.0
        %654 = vmatpush2.msra.mxu0 0.0
        %655 = vmatprep.subr.mxu0 0.0
        %656 = vmatpush2.msra.mxu0 0.0
        %657 = vmatprep.subr.mxu0 0.0
        %658 = vmatpush2.msra.mxu0 0.0
        %659 = vmatprep.subr.mxu0 0.0
        %660 = vmatpush2.msra.mxu0 0.0
        %661 = vmatprep.subr.mxu0 0.0
        %662 = vmatpush2.msra.mxu0 0.0
        %663 = vmatprep.subr.mxu0 0.0
        %664 = vmatpush2.msra.mxu0 0.0
        %665 = vmatprep.subr.mxu0 0.0
        %666 = vmatpush2.msra.mxu0 0.0
        %667 = vmatprep.subr.mxu0 0.0
        %668 = vmatpush2.msra.mxu0 0.0
        %669 = vmatprep.subr.mxu0 0.0
        %670 = vmatpush2.msra.mxu0 0.0
        %671 = vmatprep.subr.mxu0 0.0
        %672 = vmatpush2.msra.mxu0 0.0
        %673 = vmatprep.subr.mxu0 0.0
        %674 = vmatpush2.msra.mxu0 0.0
        %675 = vmatprep.subr.mxu0 0.0
        %676 = vmatpush2.msra.mxu0 0.0
        %677 = vmatprep.subr.mxu0 0.0
        %678 = vmatpush2.msra.mxu0 0.0
        %679 = vmatprep.mubr.f32.mxu0 0.0
        %680 = vmatmul.mubr.f32.gmra.mxu0 %v613
        %v681 = vpop.f32.mrf.mxu0
        %v682 = vadd.f32 0.0, %v681
        %v683 = vpop.f32.mrf.mxu0
        %684 = vdwg.mxu0
        %v685 = vmul.f32 %v528, 0.35355338
        %v686 = vlaneseq
        %v687 = vshrl.u32 %v686, 7
        %v688 = vsub.s32 0, %v687
        %v689 = vrot.slane %v685, %v688
        %691 = vbcast.lane.b32.xlu0 %v689, 256
        %v692 = vpop.permute.xlu0 %691
        %v693 = vlaneseq
        %v694 = vshrl.u32 %v693, 7
        %v695 = vsub.s32 1, %v694
        %v696 = vrot.slane %v685, %v695
        %698 = vbcast.lane.b32.xlu0 %v696, 256
        %v699 = vpop.permute.xlu0 %698
        %v700 = vlaneseq
        %v701 = vshrl.u32 %v700, 7
        %v702 = vsub.s32 2, %v701
        %v703 = vrot.slane %v685, %v702
        %705 = vbcast.lane.b32.xlu0 %v703, 256
        %v706 = vpop.permute.xlu0 %705
        %v707 = vlaneseq
        %v708 = vshrl.u32 %v707, 7
        %v709 = vsub.s32 3, %v708
        %v710 = vrot.slane %v685, %v709
        %712 = vbcast.lane.b32.xlu0 %v710, 256
        %v713 = vpop.permute.xlu0 %712
        %v714 = vlaneseq
        %v715 = vshrl.u32 %v714, 7
        %v716 = vsub.s32 4, %v715
        %v717 = vrot.slane %v685, %v716
        %719 = vbcast.lane.b32.xlu0 %v717, 256
        %v720 = vpop.permute.xlu0 %719
        %v721 = vlaneseq
        %v722 = vshrl.u32 %v721, 7
        %v723 = vsub.s32 5, %v722
        %v724 = vrot.slane %v685, %v723
        %726 = vbcast.lane.b32.xlu0 %v724, 256
        %v727 = vpop.permute.xlu0 %726
        %v728 = vlaneseq
        %v729 = vshrl.u32 %v728, 7
        %v730 = vsub.s32 6, %v729
        %v731 = vrot.slane %v685, %v730
        %733 = vbcast.lane.b32.xlu0 %v731, 256
        %v734 = vpop.permute.xlu0 %733
        %v735 = vlaneseq
        %v736 = vshrl.u32 %v735, 7
        %v737 = vsub.s32 7, %v736
        %v738 = vrot.slane %v685, %v737
        %740 = vbcast.lane.b32.xlu0 %v738, 256
        %v741 = vpop.permute.xlu0 %740
        %v743 = vcombine.high %v605, %v605
        %v745 = vunpack.c.l.s4 1966171168
        %v746 = vunpack.c.0.s8 %v745
        %v747 = vlaneseq
        %v748 = vshrl.u32 %v747, 7
        %v749 = vsub.s32 %v746, %v748
        %v750 = vrot.slane %v605, %v749
        %v752 = vunpack.c.l.s4 1966171168
        %v753 = vunpack.c.0.s8 %v752
        %v754 = vlaneseq
        %v755 = vshrl.u32 %v754, 7
        %v756 = vsub.s32 %v753, %v755
        %v757 = vrot.slane %v743, %v756
        %v758 = vcombine.high %v750, %v750
        %v759 = vcombine.high %v757, %v757
        %v761 = vunpack.c.l.s4 1966171168
        %v762 = vunpack.c.0.s8 %v761
        %v763 = vlaneseq
        %v764 = vshrl.u32 %v763, 7
        %v765 = vsub.s32 %v762, %v764
        %v766 = vrot.slane %v750, %v765
        %v768 = vunpack.c.l.s4 1966171168
        %v769 = vunpack.c.0.s8 %v768
        %v770 = vlaneseq
        %v771 = vshrl.u32 %v770, 7
        %v772 = vsub.s32 %v769, %v771
        %v773 = vrot.slane %v757, %v772
        %v775 = vunpack.c.l.s4 1966171168
        %v776 = vunpack.c.0.s8 %v775
        %v777 = vlaneseq
        %v778 = vshrl.u32 %v777, 7
        %v779 = vsub.s32 %v776, %v778
        %v780 = vrot.slane %v758, %v779
        %v782 = vunpack.c.l.s4 1966171168
        %v783 = vunpack.c.0.s8 %v782
        %v784 = vlaneseq
        %v785 = vshrl.u32 %v784, 7
        %v786 = vsub.s32 %v783, %v785
        %v787 = vrot.slane %v759, %v786
        %v788 = vcombine.high %v766, %v766
        %v789 = vcombine.high %v773, %v773
        %v790 = vcombine.high %v780, %v780
        %v791 = vcombine.high %v787, %v787
        %v792 = vlaneseq
        %v793 = vshrl.u32 %v792, 7
        %v794 = vsub.s32 0, %v793
        %v795 = vrot.slane %v766, %v794
        %v796 = vlaneseq
        %v797 = vshrl.u32 %v796, 7
        %v798 = vsub.s32 0, %v797
        %v799 = vrot.slane %v780, %v798
        %v800 = vlaneseq
        %v801 = vshrl.u32 %v800, 7
        %v802 = vsub.s32 0, %v801
        %v803 = vrot.slane %v788, %v802
        %v804 = vlaneseq
        %v805 = vshrl.u32 %v804, 7
        %v806 = vsub.s32 0, %v805
        %v807 = vrot.slane %v790, %v806
        %v808 = vlaneseq
        %v809 = vshrl.u32 %v808, 7
        %v810 = vsub.s32 0, %v809
        %v811 = vrot.slane %v773, %v810
        %v812 = vlaneseq
        %v813 = vshrl.u32 %v812, 7
        %v814 = vsub.s32 0, %v813
        %v815 = vrot.slane %v787, %v814
        %v816 = vlaneseq
        %v817 = vshrl.u32 %v816, 7
        %v818 = vsub.s32 0, %v817
        %v819 = vrot.slane %v789, %v818
        %v820 = vlaneseq
        %v821 = vshrl.u32 %v820, 7
        %v822 = vsub.s32 0, %v821
        %v823 = vrot.slane %v791, %v822
        %v832 = vmul.f32 %v692, %v795
        %v833 = vmul.f32 %v699, %v799
        %v834 = vmul.f32 %v706, %v803
        %v835 = vmul.f32 %v713, %v807
        %v836 = vmul.f32 %v720, %v811
        %v837 = vmul.f32 %v727, %v815
        %v838 = vmul.f32 %v734, %v819
        %v839 = vmul.f32 %v741, %v823
        %s841 = sor.u32 256, 8
        %842 = vbcast.lane.b32.xlu0 %v689, %s841
        %v843 = vpop.permute.xlu0 %842
        %s845 = sor.u32 256, 8
        %846 = vbcast.lane.b32.xlu0 %v696, %s845
        %v847 = vpop.permute.xlu0 %846
        %s849 = sor.u32 256, 8
        %850 = vbcast.lane.b32.xlu0 %v703, %s849
        %v851 = vpop.permute.xlu0 %850
        %s853 = sor.u32 256, 8
        %854 = vbcast.lane.b32.xlu0 %v710, %s853
        %v855 = vpop.permute.xlu0 %854
        %s857 = sor.u32 256, 8
        %858 = vbcast.lane.b32.xlu0 %v717, %s857
        %v859 = vpop.permute.xlu0 %858
        %s861 = sor.u32 256, 8
        %862 = vbcast.lane.b32.xlu0 %v724, %s861
        %v863 = vpop.permute.xlu0 %862
        %s865 = sor.u32 256, 8
        %866 = vbcast.lane.b32.xlu0 %v731, %s865
        %v867 = vpop.permute.xlu0 %866
        %s869 = sor.u32 256, 8
        %870 = vbcast.lane.b32.xlu0 %v738, %s869
        %v871 = vpop.permute.xlu0 %870
        %v872 = vmul.f32 %v843, %v795
        %v873 = vmul.f32 %v847, %v799
        %v874 = vmul.f32 %v851, %v803
        %v875 = vmul.f32 %v855, %v807
        %v876 = vmul.f32 %v859, %v811
        %v877 = vmul.f32 %v863, %v815
        %v878 = vmul.f32 %v867, %v819
        %v879 = vmul.f32 %v871, %v823
        %888 = vrot.lane.b32.xlu0 %v872, 120
        %v889 = vpop.permute.xlu0 %888
        %890 = vrot.lane.b32.xlu0 %v873, 120
        %v891 = vpop.permute.xlu0 %890
        %892 = vrot.lane.b32.xlu0 %v874, 120
        %v893 = vpop.permute.xlu0 %892
        %894 = vrot.lane.b32.xlu0 %v875, 120
        %v895 = vpop.permute.xlu0 %894
        %896 = vrot.lane.b32.xlu0 %v876, 120
        %v897 = vpop.permute.xlu0 %896
        %898 = vrot.lane.b32.xlu0 %v877, 120
        %v899 = vpop.permute.xlu0 %898
        %900 = vrot.lane.b32.xlu0 %v878, 120
        %v901 = vpop.permute.xlu0 %900
        %902 = vrot.lane.b32.xlu0 %v879, 120
        %v903 = vpop.permute.xlu0 %902
        %v912 = vadd.f32 %v832, %v889
        %v913 = vadd.f32 %v833, %v891
        %v914 = vadd.f32 %v834, %v893
        %v915 = vadd.f32 %v835, %v895
        %v916 = vadd.f32 %v836, %v897
        %v917 = vadd.f32 %v837, %v899
        %v918 = vadd.f32 %v838, %v901
        %v919 = vadd.f32 %v839, %v903
        %s921 = sor.u32 256, 16
        %922 = vbcast.lane.b32.xlu0 %v689, %s921
        %v923 = vpop.permute.xlu0 %922
        %s925 = sor.u32 256, 16
        %926 = vbcast.lane.b32.xlu0 %v696, %s925
        %v927 = vpop.permute.xlu0 %926
        %s929 = sor.u32 256, 16
        %930 = vbcast.lane.b32.xlu0 %v703, %s929
        %v931 = vpop.permute.xlu0 %930
        %s933 = sor.u32 256, 16
        %934 = vbcast.lane.b32.xlu0 %v710, %s933
        %v935 = vpop.permute.xlu0 %934
        %s937 = sor.u32 256, 16
        %938 = vbcast.lane.b32.xlu0 %v717, %s937
        %v939 = vpop.permute.xlu0 %938
        %s941 = sor.u32 256, 16
        %942 = vbcast.lane.b32.xlu0 %v724, %s941
        %v943 = vpop.permute.xlu0 %942
        %s945 = sor.u32 256, 16
        %946 = vbcast.lane.b32.xlu0 %v731, %s945
        %v947 = vpop.permute.xlu0 %946
        %s949 = sor.u32 256, 16
        %950 = vbcast.lane.b32.xlu0 %v738, %s949
        %v951 = vpop.permute.xlu0 %950
        %v952 = vmul.f32 %v923, %v795
        %v953 = vmul.f32 %v927, %v799
        %v954 = vmul.f32 %v931, %v803
        %v955 = vmul.f32 %v935, %v807
        %v956 = vmul.f32 %v939, %v811
        %v957 = vmul.f32 %v943, %v815
        %v958 = vmul.f32 %v947, %v819
        %v959 = vmul.f32 %v951, %v823
        %968 = vrot.lane.b32.xlu0 %v952, 112
        %v969 = vpop.permute.xlu0 %968
        %970 = vrot.lane.b32.xlu0 %v953, 112
        %v971 = vpop.permute.xlu0 %970
        %972 = vrot.lane.b32.xlu0 %v954, 112
        %v973 = vpop.permute.xlu0 %972
        %974 = vrot.lane.b32.xlu0 %v955, 112
        %v975 = vpop.permute.xlu0 %974
        %976 = vrot.lane.b32.xlu0 %v956, 112
        %v977 = vpop.permute.xlu0 %976
        %978 = vrot.lane.b32.xlu0 %v957, 112
        %v979 = vpop.permute.xlu0 %978
        %980 = vrot.lane.b32.xlu0 %v958, 112
        %v981 = vpop.permute.xlu0 %980
        %982 = vrot.lane.b32.xlu0 %v959, 112
        %v983 = vpop.permute.xlu0 %982
        %v992 = vadd.f32 %v912, %v969
        %v993 = vadd.f32 %v913, %v971
        %v994 = vadd.f32 %v914, %v973
        %v995 = vadd.f32 %v915, %v975
        %v996 = vadd.f32 %v916, %v977
        %v997 = vadd.f32 %v917, %v979
        %v998 = vadd.f32 %v918, %v981
        %v999 = vadd.f32 %v919, %v983
        %s1001 = sor.u32 256, 24
        %1002 = vbcast.lane.b32.xlu0 %v689, %s1001
        %v1003 = vpop.permute.xlu0 %1002
        %s1005 = sor.u32 256, 24
        %1006 = vbcast.lane.b32.xlu0 %v696, %s1005
        %v1007 = vpop.permute.xlu0 %1006
        %s1009 = sor.u32 256, 24
        %1010 = vbcast.lane.b32.xlu0 %v703, %s1009
        %v1011 = vpop.permute.xlu0 %1010
        %s1013 = sor.u32 256, 24
        %1014 = vbcast.lane.b32.xlu0 %v710, %s1013
        %v1015 = vpop.permute.xlu0 %1014
        %s1017 = sor.u32 256, 24
        %1018 = vbcast.lane.b32.xlu0 %v717, %s1017
        %v1019 = vpop.permute.xlu0 %1018
        %s1021 = sor.u32 256, 24
        %1022 = vbcast.lane.b32.xlu0 %v724, %s1021
        %v1023 = vpop.permute.xlu0 %1022
        %s1025 = sor.u32 256, 24
        %1026 = vbcast.lane.b32.xlu0 %v731, %s1025
        %v1027 = vpop.permute.xlu0 %1026
        %s1029 = sor.u32 256, 24
        %1030 = vbcast.lane.b32.xlu0 %v738, %s1029
        %v1031 = vpop.permute.xlu0 %1030
        %v1032 = vmul.f32 %v1003, %v795
        %v1033 = vmul.f32 %v1007, %v799
        %v1034 = vmul.f32 %v1011, %v803
        %v1035 = vmul.f32 %v1015, %v807
        %v1036 = vmul.f32 %v1019, %v811
        %v1037 = vmul.f32 %v1023, %v815
        %v1038 = vmul.f32 %v1027, %v819
        %v1039 = vmul.f32 %v1031, %v823
        %1048 = vrot.lane.b32.xlu0 %v1032, 104
        %v1049 = vpop.permute.xlu0 %1048
        %1050 = vrot.lane.b32.xlu0 %v1033, 104
        %v1051 = vpop.permute.xlu0 %1050
        %1052 = vrot.lane.b32.xlu0 %v1034, 104
        %v1053 = vpop.permute.xlu0 %1052
        %1054 = vrot.lane.b32.xlu0 %v1035, 104
        %v1055 = vpop.permute.xlu0 %1054
        %1056 = vrot.lane.b32.xlu0 %v1036, 104
        %v1057 = vpop.permute.xlu0 %1056
        %1058 = vrot.lane.b32.xlu0 %v1037, 104
        %v1059 = vpop.permute.xlu0 %1058
        %1060 = vrot.lane.b32.xlu0 %v1038, 104
        %v1061 = vpop.permute.xlu0 %1060
        %1062 = vrot.lane.b32.xlu0 %v1039, 104
        %v1063 = vpop.permute.xlu0 %1062
        %v1072 = vadd.f32 %v992, %v1049
        %v1073 = vadd.f32 %v993, %v1051
        %v1074 = vadd.f32 %v994, %v1053
        %v1075 = vadd.f32 %v995, %v1055
        %v1076 = vadd.f32 %v996, %v1057
        %v1077 = vadd.f32 %v997, %v1059
        %v1078 = vadd.f32 %v998, %v1061
        %v1079 = vadd.f32 %v999, %v1063
        %vm1080 = vcmask 64512
        %v1081 = vsel %vm1080, %v1072, -inf
        %1082 = vmax.xlane.f32.xlu0 %v1081
        %v1083 = vpop.xlane.xlu0 %1082
        %v1084 = vsel %vm1080, %v1073, -inf
        %1085 = vmax.xlane.f32.xlu0 %v1084
        %v1086 = vpop.xlane.xlu0 %1085
        %v1087 = vsel %vm1080, %v1074, -inf
        %1088 = vmax.xlane.f32.xlu0 %v1087
        %v1089 = vpop.xlane.xlu0 %1088
        %v1090 = vsel %vm1080, %v1075, -inf
        %1091 = vmax.xlane.f32.xlu0 %v1090
        %v1092 = vpop.xlane.xlu0 %1091
        %v1093 = vsel %vm1080, %v1076, -inf
        %1094 = vmax.xlane.f32.xlu0 %v1093
        %v1095 = vpop.xlane.xlu0 %1094
        %v1096 = vsel %vm1080, %v1077, -inf
        %1097 = vmax.xlane.f32.xlu0 %v1096
        %v1098 = vpop.xlane.xlu0 %1097
        %v1099 = vsel %vm1080, %v1078, -inf
        %1100 = vmax.xlane.f32.xlu0 %v1099
        %v1101 = vpop.xlane.xlu0 %1100
        %v1102 = vsel %vm1080, %v1079, -inf
        %1103 = vmax.xlane.f32.xlu0 %v1102
        %v1104 = vpop.xlane.xlu0 %1103
        %v1105 = vsub.f32 %v1072, %v1083
        %v1106 = vsub.f32 %v1073, %v1086
        %v1107 = vsub.f32 %v1074, %v1089
        %v1108 = vsub.f32 %v1075, %v1092
        %v1109 = vsub.f32 %v1076, %v1095
        %v1110 = vsub.f32 %v1077, %v1098
        %v1111 = vsub.f32 %v1078, %v1101
        %v1112 = vsub.f32 %v1079, %v1104
        %v1113 = vmul.f32 %v1105, 1.442695
        %v1114 = vpow.pop %v1113
        %v1115 = vmul.f32 %v1106, 1.442695
        %v1116 = vpow.pop %v1115
        %v1117 = vmul.f32 %v1107, 1.442695
        %v1118 = vpow.pop %v1117
        %v1119 = vmul.f32 %v1108, 1.442695
        %v1120 = vpow.pop %v1119
        %v1121 = vmul.f32 %v1109, 1.442695
        %v1122 = vpow.pop %v1121
        %v1123 = vmul.f32 %v1110, 1.442695
        %v1124 = vpow.pop %v1123
        %v1125 = vmul.f32 %v1111, 1.442695
        %v1126 = vpow.pop %v1125
        %v1127 = vmul.f32 %v1112, 1.442695
        %v1128 = vpow.pop %v1127
        %v1129 = vsel %vm1080, %v1114, 0.0
        %1130 = vadd.xlane.f32.xlu0 %v1129
        %v1131 = vpop.xlane.xlu0 %1130
        %v1132 = vsel %vm1080, %v1116, 0.0
        %1133 = vadd.xlane.f32.xlu0 %v1132
        %v1134 = vpop.xlane.xlu0 %1133
        %v1135 = vsel %vm1080, %v1118, 0.0
        %1136 = vadd.xlane.f32.xlu0 %v1135
        %v1137 = vpop.xlane.xlu0 %1136
        %v1138 = vsel %vm1080, %v1120, 0.0
        %1139 = vadd.xlane.f32.xlu0 %v1138
        %v1140 = vpop.xlane.xlu0 %1139
        %v1141 = vsel %vm1080, %v1122, 0.0
        %1142 = vadd.xlane.f32.xlu0 %v1141
        %v1143 = vpop.xlane.xlu0 %1142
        %v1144 = vsel %vm1080, %v1124, 0.0
        %1145 = vadd.xlane.f32.xlu0 %v1144
        %v1146 = vpop.xlane.xlu0 %1145
        %v1147 = vsel %vm1080, %v1126, 0.0
        %1148 = vadd.xlane.f32.xlu0 %v1147
        %v1149 = vpop.xlane.xlu0 %1148
        %v1150 = vsel %vm1080, %v1128, 0.0
        %1151 = vadd.xlane.f32.xlu0 %v1150
        %v1152 = vpop.xlane.xlu0 %1151
        %v1153 = vrcp.pop %v1131
        %v1154 = vrcp.pop %v1134
        %v1155 = vrcp.pop %v1137
        %v1156 = vrcp.pop %v1140
        %v1157 = vrcp.pop %v1143
        %v1158 = vrcp.pop %v1146
        %v1159 = vrcp.pop %v1149
        %v1160 = vrcp.pop %v1152
        %v1161 = vmul.f32 %v1114, %v1153
        %v1162 = vmul.f32 %v1116, %v1154
        %v1163 = vmul.f32 %v1118, %v1155
        %v1164 = vmul.f32 %v1120, %v1156
        %v1165 = vmul.f32 %v1122, %v1157
        %v1166 = vmul.f32 %v1124, %v1158
        %v1167 = vmul.f32 %v1126, %v1159
        %v1168 = vmul.f32 %v1128, %v1160
        %v1170 = vcombine.high %v682, %v682
        %v1172 = vunpack.c.l.s4 1966171168
        %v1173 = vunpack.c.0.s8 %v1172
        %v1174 = vlaneseq
        %v1175 = vshrl.u32 %v1174, 7
        %v1176 = vsub.s32 %v1173, %v1175
        %v1177 = vrot.slane %v682, %v1176
        %v1179 = vunpack.c.l.s4 1966171168
        %v1180 = vunpack.c.0.s8 %v1179
        %v1181 = vlaneseq
        %v1182 = vshrl.u32 %v1181, 7
        %v1183 = vsub.s32 %v1180, %v1182
        %v1184 = vrot.slane %v1170, %v1183
        %v1185 = vcombine.high %v1177, %v1177
        %v1186 = vcombine.high %v1184, %v1184
        %v1188 = vunpack.c.l.s4 1966171168
        %v1189 = vunpack.c.0.s8 %v1188
        %v1190 = vlaneseq
        %v1191 = vshrl.u32 %v1190, 7
        %v1192 = vsub.s32 %v1189, %v1191
        %v1193 = vrot.slane %v1177, %v1192
        %v1195 = vunpack.c.l.s4 1966171168
        %v1196 = vunpack.c.0.s8 %v1195
        %v1197 = vlaneseq
        %v1198 = vshrl.u32 %v1197, 7
        %v1199 = vsub.s32 %v1196, %v1198
        %v1200 = vrot.slane %v1184, %v1199
        %v1202 = vunpack.c.l.s4 1966171168
        %v1203 = vunpack.c.0.s8 %v1202
        %v1204 = vlaneseq
        %v1205 = vshrl.u32 %v1204, 7
        %v1206 = vsub.s32 %v1203, %v1205
        %v1207 = vrot.slane %v1185, %v1206
        %v1209 = vunpack.c.l.s4 1966171168
        %v1210 = vunpack.c.0.s8 %v1209
        %v1211 = vlaneseq
        %v1212 = vshrl.u32 %v1211, 7
        %v1213 = vsub.s32 %v1210, %v1212
        %v1214 = vrot.slane %v1186, %v1213
        %v1215 = vcombine.high %v1193, %v1193
        %v1216 = vcombine.high %v1200, %v1200
        %v1217 = vcombine.high %v1207, %v1207
        %v1218 = vcombine.high %v1214, %v1214
        %v1219 = vlaneseq
        %v1220 = vshrl.u32 %v1219, 7
        %v1221 = vsub.s32 0, %v1220
        %v1222 = vrot.slane %v1193, %v1221
        %v1223 = vlaneseq
        %v1224 = vshrl.u32 %v1223, 7
        %v1225 = vsub.s32 0, %v1224
        %v1226 = vrot.slane %v1207, %v1225
        %v1227 = vlaneseq
        %v1228 = vshrl.u32 %v1227, 7
        %v1229 = vsub.s32 0, %v1228
        %v1230 = vrot.slane %v1215, %v1229
        %v1231 = vlaneseq
        %v1232 = vshrl.u32 %v1231, 7
        %v1233 = vsub.s32 0, %v1232
        %v1234 = vrot.slane %v1217, %v1233
        %v1235 = vlaneseq
        %v1236 = vshrl.u32 %v1235, 7
        %v1237 = vsub.s32 0, %v1236
        %v1238 = vrot.slane %v1200, %v1237
        %v1239 = vlaneseq
        %v1240 = vshrl.u32 %v1239, 7
        %v1241 = vsub.s32 0, %v1240
        %v1242 = vrot.slane %v1214, %v1241
        %v1243 = vlaneseq
        %v1244 = vshrl.u32 %v1243, 7
        %v1245 = vsub.s32 0, %v1244
        %v1246 = vrot.slane %v1216, %v1245
        %v1247 = vlaneseq
        %v1248 = vshrl.u32 %v1247, 7
        %v1249 = vsub.s32 0, %v1248
        %v1250 = vrot.slane %v1218, %v1249
        %v1259 = vmul.f32 %v1161, %v1222
        %v1260 = vmul.f32 %v1162, %v1226
        %v1261 = vmul.f32 %v1163, %v1230
        %v1262 = vmul.f32 %v1164, %v1234
        %v1263 = vmul.f32 %v1165, %v1238
        %v1264 = vmul.f32 %v1166, %v1242
        %v1265 = vmul.f32 %v1167, %v1246
        %v1266 = vmul.f32 %v1168, %v1250
        %v1267 = vsel %vm1080, %v1259, 0.0
        %1268 = vadd.xlane.f32.xlu0 %v1267
        %v1269 = vpop.xlane.xlu0 %1268
        %v1270 = vsel %vm1080, %v1260, 0.0
        %1271 = vadd.xlane.f32.xlu0 %v1270
        %v1272 = vpop.xlane.xlu0 %1271
        %v1273 = vsel %vm1080, %v1261, 0.0
        %1274 = vadd.xlane.f32.xlu0 %v1273
        %v1275 = vpop.xlane.xlu0 %1274
        %v1276 = vsel %vm1080, %v1262, 0.0
        %1277 = vadd.xlane.f32.xlu0 %v1276
        %v1278 = vpop.xlane.xlu0 %1277
        %v1279 = vsel %vm1080, %v1263, 0.0
        %1280 = vadd.xlane.f32.xlu0 %v1279
        %v1281 = vpop.xlane.xlu0 %1280
        %v1282 = vsel %vm1080, %v1264, 0.0
        %1283 = vadd.xlane.f32.xlu0 %v1282
        %v1284 = vpop.xlane.xlu0 %1283
        %v1285 = vsel %vm1080, %v1265, 0.0
        %1286 = vadd.xlane.f32.xlu0 %v1285
        %v1287 = vpop.xlane.xlu0 %1286
        %v1288 = vsel %vm1080, %v1266, 0.0
        %1289 = vadd.xlane.f32.xlu0 %v1288
        %v1290 = vpop.xlane.xlu0 %1289
        %v1299 = vlaneseq
        %v1300 = vand.u32 %v1299, 127
        %v1301 = vlaneseq
        %v1302 = vshrl.u32 %v1301, 7
        %v1303 = vsub.s32 %v1300, %v1302
        %v1304 = vrot.slane %v1269, %v1303
        %v1305 = vlaneseq
        %v1306 = vshrl.u32 %v1305, 7
        %v1307 = vsub.s32 %v1300, %v1306
        %v1308 = vrot.slane %v1272, %v1307
        %v1309 = vlaneseq
        %v1310 = vshrl.u32 %v1309, 7
        %v1311 = vsub.s32 %v1300, %v1310
        %v1312 = vrot.slane %v1275, %v1311
        %v1313 = vlaneseq
        %v1314 = vshrl.u32 %v1313, 7
        %v1315 = vsub.s32 %v1300, %v1314
        %v1316 = vrot.slane %v1278, %v1315
        %v1317 = vlaneseq
        %v1318 = vshrl.u32 %v1317, 7
        %v1319 = vsub.s32 %v1300, %v1318
        %v1320 = vrot.slane %v1281, %v1319
        %v1321 = vlaneseq
        %v1322 = vshrl.u32 %v1321, 7
        %v1323 = vsub.s32 %v1300, %v1322
        %v1324 = vrot.slane %v1284, %v1323
        %v1325 = vlaneseq
        %v1326 = vshrl.u32 %v1325, 7
        %v1327 = vsub.s32 %v1300, %v1326
        %v1328 = vrot.slane %v1287, %v1327
        %v1329 = vlaneseq
        %v1330 = vshrl.u32 %v1329, 7
        %v1331 = vsub.s32 %v1300, %v1330
        %v1332 = vrot.slane %v1290, %v1331
        %vm1333 = vcmask 1041409
        %v1334 = vsel %vm1333, %v1308, %v1304
        %vm1335 = vcmask 1042434
        %v1336 = vsel %vm1335, %v1312, %v1334
        %vm1337 = vcmask 1043459
        %v1338 = vsel %vm1337, %v1316, %v1336
        %vm1339 = vcmask 1044484
        %v1340 = vsel %vm1339, %v1320, %v1338
        %vm1341 = vcmask 1045509
        %v1342 = vsel %vm1341, %v1324, %v1340
        %vm1343 = vcmask 1046534
        %v1344 = vsel %vm1343, %v1328, %v1342
        %vm1345 = vcmask 1047559
        %v1346 = vsel %vm1345, %v1332, %v1344
        %1348 = vxpose.xlu0.b32.start [1/16] %v1346, 128
        %1349 = vxpose.xlu0.b32.cont [2/16] 0.0, 128
        %1350 = vxpose.xlu0.b32.cont [3/16] 0.0, 128
        %1351 = vxpose.xlu0.b32.cont [4/16] 0.0, 128
        %1352 = vxpose.xlu0.b32.cont [5/16] 0.0, 128
        %1353 = vxpose.xlu0.b32.cont [6/16] 0.0, 128
        %1354 = vxpose.xlu0.b32.cont [7/16] 0.0, 128
        %1355 = vxpose.xlu0.b32.cont [8/16] 0.0, 128
        %1356 = vxpose.xlu0.b32.cont [9/16] 0.0, 128
        %1357 = vxpose.xlu0.b32.cont [10/16] 0.0, 128
        %1358 = vxpose.xlu0.b32.cont [11/16] 0.0, 128
        %1359 = vxpose.xlu0.b32.cont [12/16] 0.0, 128
        %1360 = vxpose.xlu0.b32.cont [13/16] 0.0, 128
        %1361 = vxpose.xlu0.b32.cont [14/16] 0.0, 128
        %1362 = vxpose.xlu0.b32.cont [15/16] 0.0, 128
        %1363 = vxpose.xlu0.b32.end [16/16] 0.0, 128
        %v1364 = vpop.trf.xlu0
        %v1365 = vpop.trf.xlu0
        %v1366 = vpop.trf.xlu0
        %v1367 = vpop.trf.xlu0
        %v1368 = vpop.trf.xlu0
        %v1369 = vpop.trf.xlu0
        %v1370 = vpop.trf.xlu0
        %v1371 = vpop.trf.xlu0
        %v1372 = vpop.trf.xlu0
        %v1373 = vpop.trf.xlu0
        %v1374 = vpop.trf.xlu0
        %v1375 = vpop.trf.xlu0
        %v1376 = vpop.trf.xlu0
        %v1377 = vpop.trf.xlu0
        %v1378 = vpop.trf.xlu0
        %v1379 = vpop.trf.xlu0
        %1380 = vrot.lane.b32.xlu0 %v1222, 120
        %v1381 = vpop.permute.xlu0 %1380
        %1382 = vrot.lane.b32.xlu0 %v1226, 120
        %v1383 = vpop.permute.xlu0 %1382
        %1384 = vrot.lane.b32.xlu0 %v1230, 120
        %v1385 = vpop.permute.xlu0 %1384
        %1386 = vrot.lane.b32.xlu0 %v1234, 120
        %v1387 = vpop.permute.xlu0 %1386
        %1388 = vrot.lane.b32.xlu0 %v1238, 120
        %v1389 = vpop.permute.xlu0 %1388
        %1390 = vrot.lane.b32.xlu0 %v1242, 120
        %v1391 = vpop.permute.xlu0 %1390
        %1392 = vrot.lane.b32.xlu0 %v1246, 120
        %v1393 = vpop.permute.xlu0 %1392
        %1394 = vrot.lane.b32.xlu0 %v1250, 120
        %v1395 = vpop.permute.xlu0 %1394
        %v1404 = vmul.f32 %v1161, %v1381
        %v1405 = vmul.f32 %v1162, %v1383
        %v1406 = vmul.f32 %v1163, %v1385
        %v1407 = vmul.f32 %v1164, %v1387
        %v1408 = vmul.f32 %v1165, %v1389
        %v1409 = vmul.f32 %v1166, %v1391
        %v1410 = vmul.f32 %v1167, %v1393
        %v1411 = vmul.f32 %v1168, %v1395
        %v1412 = vsel %vm1080, %v1404, 0.0
        %1413 = vadd.xlane.f32.xlu0 %v1412
        %v1414 = vpop.xlane.xlu0 %1413
        %v1415 = vsel %vm1080, %v1405, 0.0
        %1416 = vadd.xlane.f32.xlu0 %v1415
        %v1417 = vpop.xlane.xlu0 %1416
        %v1418 = vsel %vm1080, %v1406, 0.0
        %1419 = vadd.xlane.f32.xlu0 %v1418
        %v1420 = vpop.xlane.xlu0 %1419
        %v1421 = vsel %vm1080, %v1407, 0.0
        %1422 = vadd.xlane.f32.xlu0 %v1421
        %v1423 = vpop.xlane.xlu0 %1422
        %v1424 = vsel %vm1080, %v1408, 0.0
        %1425 = vadd.xlane.f32.xlu0 %v1424
        %v1426 = vpop.xlane.xlu0 %1425
        %v1427 = vsel %vm1080, %v1409, 0.0
        %1428 = vadd.xlane.f32.xlu0 %v1427
        %v1429 = vpop.xlane.xlu0 %1428
        %v1430 = vsel %vm1080, %v1410, 0.0
        %1431 = vadd.xlane.f32.xlu0 %v1430
        %v1432 = vpop.xlane.xlu0 %1431
        %v1433 = vsel %vm1080, %v1411, 0.0
        %1434 = vadd.xlane.f32.xlu0 %v1433
        %v1435 = vpop.xlane.xlu0 %1434
        %v1444 = vlaneseq
        %v1445 = vshrl.u32 %v1444, 7
        %v1446 = vsub.s32 %v1300, %v1445
        %v1447 = vrot.slane %v1414, %v1446
        %v1448 = vlaneseq
        %v1449 = vshrl.u32 %v1448, 7
        %v1450 = vsub.s32 %v1300, %v1449
        %v1451 = vrot.slane %v1417, %v1450
        %v1452 = vlaneseq
        %v1453 = vshrl.u32 %v1452, 7
        %v1454 = vsub.s32 %v1300, %v1453
        %v1455 = vrot.slane %v1420, %v1454
        %v1456 = vlaneseq
        %v1457 = vshrl.u32 %v1456, 7
        %v1458 = vsub.s32 %v1300, %v1457
        %v1459 = vrot.slane %v1423, %v1458
        %v1460 = vlaneseq
        %v1461 = vshrl.u32 %v1460, 7
        %v1462 = vsub.s32 %v1300, %v1461
        %v1463 = vrot.slane %v1426, %v1462
        %v1464 = vlaneseq
        %v1465 = vshrl.u32 %v1464, 7
        %v1466 = vsub.s32 %v1300, %v1465
        %v1467 = vrot.slane %v1429, %v1466
        %v1468 = vlaneseq
        %v1469 = vshrl.u32 %v1468, 7
        %v1470 = vsub.s32 %v1300, %v1469
        %v1471 = vrot.slane %v1432, %v1470
        %v1472 = vlaneseq
        %v1473 = vshrl.u32 %v1472, 7
        %v1474 = vsub.s32 %v1300, %v1473
        %v1475 = vrot.slane %v1435, %v1474
        %v1476 = vsel %vm1333, %v1451, %v1447
        %v1477 = vsel %vm1335, %v1455, %v1476
        %v1478 = vsel %vm1337, %v1459, %v1477
        %v1479 = vsel %vm1339, %v1463, %v1478
        %v1480 = vsel %vm1341, %v1467, %v1479
        %v1481 = vsel %vm1343, %v1471, %v1480
        %v1482 = vsel %vm1345, %v1475, %v1481
        %1484 = vxpose.xlu0.b32.start [1/16] %v1482, 128
        %1485 = vxpose.xlu0.b32.cont [2/16] 0.0, 128
        %1486 = vxpose.xlu0.b32.cont [3/16] 0.0, 128
        %1487 = vxpose.xlu0.b32.cont [4/16] 0.0, 128
        %1488 = vxpose.xlu0.b32.cont [5/16] 0.0, 128
        %1489 = vxpose.xlu0.b32.cont [6/16] 0.0, 128
        %1490 = vxpose.xlu0.b32.cont [7/16] 0.0, 128
        %1491 = vxpose.xlu0.b32.cont [8/16] 0.0, 128
        %1492 = vxpose.xlu0.b32.cont [9/16] 0.0, 128
        %1493 = vxpose.xlu0.b32.cont [10/16] 0.0, 128
        %1494 = vxpose.xlu0.b32.cont [11/16] 0.0, 128
        %1495 = vxpose.xlu0.b32.cont [12/16] 0.0, 128
        %1496 = vxpose.xlu0.b32.cont [13/16] 0.0, 128
        %1497 = vxpose.xlu0.b32.cont [14/16] 0.0, 128
        %1498 = vxpose.xlu0.b32.cont [15/16] 0.0, 128
        %1499 = vxpose.xlu0.b32.end [16/16] 0.0, 128
        %v1500 = vpop.trf.xlu0
        %v1501 = vpop.trf.xlu0
        %v1502 = vpop.trf.xlu0
        %v1503 = vpop.trf.xlu0
        %v1504 = vpop.trf.xlu0
        %v1505 = vpop.trf.xlu0
        %v1506 = vpop.trf.xlu0
        %v1507 = vpop.trf.xlu0
        %v1508 = vpop.trf.xlu0
        %v1509 = vpop.trf.xlu0
        %v1510 = vpop.trf.xlu0
        %v1511 = vpop.trf.xlu0
        %v1512 = vpop.trf.xlu0
        %v1513 = vpop.trf.xlu0
        %v1514 = vpop.trf.xlu0
        %v1515 = vpop.trf.xlu0
        %1516 = vrot.lane.b32.xlu0 %v1222, 112
        %v1517 = vpop.permute.xlu0 %1516
        %1518 = vrot.lane.b32.xlu0 %v1226, 112
        %v1519 = vpop.permute.xlu0 %1518
        %1520 = vrot.lane.b32.xlu0 %v1230, 112
        %v1521 = vpop.permute.xlu0 %1520
        %1522 = vrot.lane.b32.xlu0 %v1234, 112
        %v1523 = vpop.permute.xlu0 %1522
        %1524 = vrot.lane.b32.xlu0 %v1238, 112
        %v1525 = vpop.permute.xlu0 %1524
        %1526 = vrot.lane.b32.xlu0 %v1242, 112
        %v1527 = vpop.permute.xlu0 %1526
        %1528 = vrot.lane.b32.xlu0 %v1246, 112
        %v1529 = vpop.permute.xlu0 %1528
        %1530 = vrot.lane.b32.xlu0 %v1250, 112
        %v1531 = vpop.permute.xlu0 %1530
        %v1540 = vmul.f32 %v1161, %v1517
        %v1541 = vmul.f32 %v1162, %v1519
        %v1542 = vmul.f32 %v1163, %v1521
        %v1543 = vmul.f32 %v1164, %v1523
        %v1544 = vmul.f32 %v1165, %v1525
        %v1545 = vmul.f32 %v1166, %v1527
        %v1546 = vmul.f32 %v1167, %v1529
        %v1547 = vmul.f32 %v1168, %v1531
        %v1548 = vsel %vm1080, %v1540, 0.0
        %1549 = vadd.xlane.f32.xlu0 %v1548
        %v1550 = vpop.xlane.xlu0 %1549
        %v1551 = vsel %vm1080, %v1541, 0.0
        %1552 = vadd.xlane.f32.xlu0 %v1551
        %v1553 = vpop.xlane.xlu0 %1552
        %v1554 = vsel %vm1080, %v1542, 0.0
        %1555 = vadd.xlane.f32.xlu0 %v1554
        %v1556 = vpop.xlane.xlu0 %1555
        %v1557 = vsel %vm1080, %v1543, 0.0
        %1558 = vadd.xlane.f32.xlu0 %v1557
        %v1559 = vpop.xlane.xlu0 %1558
        %v1560 = vsel %vm1080, %v1544, 0.0
        %1561 = vadd.xlane.f32.xlu0 %v1560
        %v1562 = vpop.xlane.xlu0 %1561
        %v1563 = vsel %vm1080, %v1545, 0.0
        %1564 = vadd.xlane.f32.xlu0 %v1563
        %v1565 = vpop.xlane.xlu0 %1564
        %v1566 = vsel %vm1080, %v1546, 0.0
        %1567 = vadd.xlane.f32.xlu0 %v1566
        %v1568 = vpop.xlane.xlu0 %1567
        %v1569 = vsel %vm1080, %v1547, 0.0
        %1570 = vadd.xlane.f32.xlu0 %v1569
        %v1571 = vpop.xlane.xlu0 %1570
        %v1580 = vlaneseq
        %v1581 = vshrl.u32 %v1580, 7
        %v1582 = vsub.s32 %v1300, %v1581
        %v1583 = vrot.slane %v1550, %v1582
        %v1584 = vlaneseq
        %v1585 = vshrl.u32 %v1584, 7
        %v1586 = vsub.s32 %v1300, %v1585
        %v1587 = vrot.slane %v1553, %v1586
        %v1588 = vlaneseq
        %v1589 = vshrl.u32 %v1588, 7
        %v1590 = vsub.s32 %v1300, %v1589
        %v1591 = vrot.slane %v1556, %v1590
        %v1592 = vlaneseq
        %v1593 = vshrl.u32 %v1592, 7
        %v1594 = vsub.s32 %v1300, %v1593
        %v1595 = vrot.slane %v1559, %v1594
        %v1596 = vlaneseq
        %v1597 = vshrl.u32 %v1596, 7
        %v1598 = vsub.s32 %v1300, %v1597
        %v1599 = vrot.slane %v1562, %v1598
        %v1600 = vlaneseq
        %v1601 = vshrl.u32 %v1600, 7
        %v1602 = vsub.s32 %v1300, %v1601
        %v1603 = vrot.slane %v1565, %v1602
        %v1604 = vlaneseq
        %v1605 = vshrl.u32 %v1604, 7
        %v1606 = vsub.s32 %v1300, %v1605
        %v1607 = vrot.slane %v1568, %v1606
        %v1608 = vlaneseq
        %v1609 = vshrl.u32 %v1608, 7
        %v1610 = vsub.s32 %v1300, %v1609
        %v1611 = vrot.slane %v1571, %v1610
        %v1612 = vsel %vm1333, %v1587, %v1583
        %v1613 = vsel %vm1335, %v1591, %v1612
        %v1614 = vsel %vm1337, %v1595, %v1613
        %v1615 = vsel %vm1339, %v1599, %v1614
        %v1616 = vsel %vm1341, %v1603, %v1615
        %v1617 = vsel %vm1343, %v1607, %v1616
        %v1618 = vsel %vm1345, %v1611, %v1617
        %1620 = vxpose.xlu0.b32.start [1/16] %v1618, 128
        %1621 = vxpose.xlu0.b32.cont [2/16] 0.0, 128
        %1622 = vxpose.xlu0.b32.cont [3/16] 0.0, 128
        %1623 = vxpose.xlu0.b32.cont [4/16] 0.0, 128
        %1624 = vxpose.xlu0.b32.cont [5/16] 0.0, 128
        %1625 = vxpose.xlu0.b32.cont [6/16] 0.0, 128
        %1626 = vxpose.xlu0.b32.cont [7/16] 0.0, 128
        %1627 = vxpose.xlu0.b32.cont [8/16] 0.0, 128
        %1628 = vxpose.xlu0.b32.cont [9/16] 0.0, 128
        %1629 = vxpose.xlu0.b32.cont [10/16] 0.0, 128
        %1630 = vxpose.xlu0.b32.cont [11/16] 0.0, 128
        %1631 = vxpose.xlu0.b32.cont [12/16] 0.0, 128
        %1632 = vxpose.xlu0.b32.cont [13/16] 0.0, 128
        %1633 = vxpose.xlu0.b32.cont [14/16] 0.0, 128
        %1634 = vxpose.xlu0.b32.cont [15/16] 0.0, 128
        %1635 = vxpose.xlu0.b32.end [16/16] 0.0, 128
        %v1636 = vpop.trf.xlu0
        %v1637 = vpop.trf.xlu0
        %v1638 = vpop.trf.xlu0
        %v1639 = vpop.trf.xlu0
        %v1640 = vpop.trf.xlu0
        %v1641 = vpop.trf.xlu0
        %v1642 = vpop.trf.xlu0
        %v1643 = vpop.trf.xlu0
        %v1644 = vpop.trf.xlu0
        %v1645 = vpop.trf.xlu0
        %v1646 = vpop.trf.xlu0
        %v1647 = vpop.trf.xlu0
        %v1648 = vpop.trf.xlu0
        %v1649 = vpop.trf.xlu0
        %v1650 = vpop.trf.xlu0
        %v1651 = vpop.trf.xlu0
        %1652 = vrot.lane.b32.xlu0 %v1222, 104
        %v1653 = vpop.permute.xlu0 %1652
        %1654 = vrot.lane.b32.xlu0 %v1226, 104
        %v1655 = vpop.permute.xlu0 %1654
        %1656 = vrot.lane.b32.xlu0 %v1230, 104
        %v1657 = vpop.permute.xlu0 %1656
        %1658 = vrot.lane.b32.xlu0 %v1234, 104
        %v1659 = vpop.permute.xlu0 %1658
        %1660 = vrot.lane.b32.xlu0 %v1238, 104
        %v1661 = vpop.permute.xlu0 %1660
        %1662 = vrot.lane.b32.xlu0 %v1242, 104
        %v1663 = vpop.permute.xlu0 %1662
        %1664 = vrot.lane.b32.xlu0 %v1246, 104
        %v1665 = vpop.permute.xlu0 %1664
        %1666 = vrot.lane.b32.xlu0 %v1250, 104
        %v1667 = vpop.permute.xlu0 %1666
        %v1676 = vmul.f32 %v1161, %v1653
        %v1677 = vmul.f32 %v1162, %v1655
        %v1678 = vmul.f32 %v1163, %v1657
        %v1679 = vmul.f32 %v1164, %v1659
        %v1680 = vmul.f32 %v1165, %v1661
        %v1681 = vmul.f32 %v1166, %v1663
        %v1682 = vmul.f32 %v1167, %v1665
        %v1683 = vmul.f32 %v1168, %v1667
        %v1684 = vsel %vm1080, %v1676, 0.0
        %1685 = vadd.xlane.f32.xlu0 %v1684
        %v1686 = vpop.xlane.xlu0 %1685
        %v1687 = vsel %vm1080, %v1677, 0.0
        %1688 = vadd.xlane.f32.xlu0 %v1687
        %v1689 = vpop.xlane.xlu0 %1688
        %v1690 = vsel %vm1080, %v1678, 0.0
        %1691 = vadd.xlane.f32.xlu0 %v1690
        %v1692 = vpop.xlane.xlu0 %1691
        %v1693 = vsel %vm1080, %v1679, 0.0
        %1694 = vadd.xlane.f32.xlu0 %v1693
        %v1695 = vpop.xlane.xlu0 %1694
        %v1696 = vsel %vm1080, %v1680, 0.0
        %1697 = vadd.xlane.f32.xlu0 %v1696
        %v1698 = vpop.xlane.xlu0 %1697
        %v1699 = vsel %vm1080, %v1681, 0.0
        %1700 = vadd.xlane.f32.xlu0 %v1699
        %v1701 = vpop.xlane.xlu0 %1700
        %v1702 = vsel %vm1080, %v1682, 0.0
        %1703 = vadd.xlane.f32.xlu0 %v1702
        %v1704 = vpop.xlane.xlu0 %1703
        %v1705 = vsel %vm1080, %v1683, 0.0
        %1706 = vadd.xlane.f32.xlu0 %v1705
        %v1707 = vpop.xlane.xlu0 %1706
        %v1716 = vlaneseq
        %v1717 = vshrl.u32 %v1716, 7
        %v1718 = vsub.s32 %v1300, %v1717
        %v1719 = vrot.slane %v1686, %v1718
        %v1720 = vlaneseq
        %v1721 = vshrl.u32 %v1720, 7
        %v1722 = vsub.s32 %v1300, %v1721
        %v1723 = vrot.slane %v1689, %v1722
        %v1724 = vlaneseq
        %v1725 = vshrl.u32 %v1724, 7
        %v1726 = vsub.s32 %v1300, %v1725
        %v1727 = vrot.slane %v1692, %v1726
        %v1728 = vlaneseq
        %v1729 = vshrl.u32 %v1728, 7
        %v1730 = vsub.s32 %v1300, %v1729
        %v1731 = vrot.slane %v1695, %v1730
        %v1732 = vlaneseq
        %v1733 = vshrl.u32 %v1732, 7
        %v1734 = vsub.s32 %v1300, %v1733
        %v1735 = vrot.slane %v1698, %v1734
        %v1736 = vlaneseq
        %v1737 = vshrl.u32 %v1736, 7
        %v1738 = vsub.s32 %v1300, %v1737
        %v1739 = vrot.slane %v1701, %v1738
        %v1740 = vlaneseq
        %v1741 = vshrl.u32 %v1740, 7
        %v1742 = vsub.s32 %v1300, %v1741
        %v1743 = vrot.slane %v1704, %v1742
        %v1744 = vlaneseq
        %v1745 = vshrl.u32 %v1744, 7
        %v1746 = vsub.s32 %v1300, %v1745
        %v1747 = vrot.slane %v1707, %v1746
        %v1748 = vsel %vm1333, %v1723, %v1719
        %v1749 = vsel %vm1335, %v1727, %v1748
        %v1750 = vsel %vm1337, %v1731, %v1749
        %v1751 = vsel %vm1339, %v1735, %v1750
        %v1752 = vsel %vm1341, %v1739, %v1751
        %v1753 = vsel %vm1343, %v1743, %v1752
        %v1754 = vsel %vm1345, %v1747, %v1753
        %1756 = vxpose.xlu0.b32.start [1/16] %v1754, 128
        %1757 = vxpose.xlu0.b32.cont [2/16] 0.0, 128
        %1758 = vxpose.xlu0.b32.cont [3/16] 0.0, 128
        %1759 = vxpose.xlu0.b32.cont [4/16] 0.0, 128
        %1760 = vxpose.xlu0.b32.cont [5/16] 0.0, 128
        %1761 = vxpose.xlu0.b32.cont [6/16] 0.0, 128
        %1762 = vxpose.xlu0.b32.cont [7/16] 0.0, 128
        %1763 = vxpose.xlu0.b32.cont [8/16] 0.0, 128
        %1764 = vxpose.xlu0.b32.cont [9/16] 0.0, 128
        %1765 = vxpose.xlu0.b32.cont [10/16] 0.0, 128
        %1766 = vxpose.xlu0.b32.cont [11/16] 0.0, 128
        %1767 = vxpose.xlu0.b32.cont [12/16] 0.0, 128
        %1768 = vxpose.xlu0.b32.cont [13/16] 0.0, 128
        %1769 = vxpose.xlu0.b32.cont [14/16] 0.0, 128
        %1770 = vxpose.xlu0.b32.cont [15/16] 0.0, 128
        %1771 = vxpose.xlu0.b32.end [16/16] 0.0, 128
        %v1772 = vpop.trf.xlu0
        %v1773 = vpop.trf.xlu0
        %v1774 = vpop.trf.xlu0
        %v1775 = vpop.trf.xlu0
        %v1776 = vpop.trf.xlu0
        %v1777 = vpop.trf.xlu0
        %v1778 = vpop.trf.xlu0
        %v1779 = vpop.trf.xlu0
        %v1780 = vpop.trf.xlu0
        %v1781 = vpop.trf.xlu0
        %v1782 = vpop.trf.xlu0
        %v1783 = vpop.trf.xlu0
        %v1784 = vpop.trf.xlu0
        %v1785 = vpop.trf.xlu0
        %v1786 = vpop.trf.xlu0
        %v1787 = vpop.trf.xlu0
        %1789 = vrot.lane.b32.xlu0 %v1500, 8
        %v1790 = vpop.permute.xlu0 %1789
        %1793 = vrot.lane.b32.xlu0 %v1636, 16
        %v1794 = vpop.permute.xlu0 %1793
        %1797 = vrot.lane.b32.xlu0 %v1772, 24
        %v1798 = vpop.permute.xlu0 %1797
        %v1800 = vsel %vm1080, %v1364, %v1790
        %vm1801 = vcmask 130048
        %v1802 = vsel %vm1801, %v1800, %v1794
        %vm1803 = vcmask 195584
        %v1804 = vsel %vm1803, %v1802, %v1798
        %v1805 = vld [vmem:[#allocation13] sm:$0xff]
        %v1806 = vld [vmem:[#allocation13 + $0x8] sm:$0xff]
        %v1807 = vld [vmem:[#allocation13 + $0x10] sm:$0xff]
        %v1808 = vld [vmem:[#allocation13 + $0x18] sm:$0xff]
        %v1809 = vld [vmem:[%s7] sm:$0x1]
        %v1811 = vlaneseq
        %v1812 = vshrl.u32 %v1811, 7
        %v1813 = vsub.s32 0, %v1812
        %v1814 = vrot.slane %v1809, %v1813
        %v1817 = vsel %vm457, %v1804, 0
        %1819 = vmatprep.subr.mxu0 0.0
        %1820 = vmatpush1.msra.mxu0 0.0
        %1821 = vmatprep.subr.mxu0 0.0
        %1822 = vmatpush1.msra.mxu0 0.0
        %1823 = vmatprep.subr.mxu0 0.0
        %1824 = vmatpush1.msra.mxu0 0.0
        %1825 = vmatprep.subr.mxu0 0.0
        %1826 = vmatpush1.msra.mxu0 0.0
        %1827 = vmatprep.subr.mxu0 0.0
        %1828 = vmatpush1.msra.mxu0 0.0
        %1829 = vmatprep.subr.mxu0 0.0
        %1830 = vmatpush1.msra.mxu0 0.0
        %1831 = vmatprep.subr.mxu0 0.0
        %1832 = vmatpush1.msra.mxu0 0.0
        %1833 = vmatprep.subr.mxu0 0.0
        %1834 = vmatpush1.msra.mxu0 0.0
        %1835 = vmatprep.subr.mxu0 0.0
        %1836 = vmatpush1.msra.mxu0 0.0
        %1837 = vmatprep.subr.mxu0 0.0
        %1838 = vmatpush1.msra.mxu0 0.0
        %1839 = vmatprep.subr.mxu0 0.0
        %1840 = vmatpush1.msra.mxu0 0.0
        %1841 = vmatprep.subr.mxu0 0.0
        %1842 = vmatpush1.msra.mxu0 0.0
        %1843 = vmatprep.subr.mxu0 0.0
        %1844 = vmatpush1.msra.mxu0 %v1808
        %1845 = vmatprep.subr.mxu0 0.0
        %1846 = vmatpush1.msra.mxu0 %v1807
        %1847 = vmatprep.subr.mxu0 0.0
        %1848 = vmatpush1.msra.mxu0 %v1806
        %1849 = vmatprep.subr.mxu0 0.0
        %1850 = vmatpush1.msra.mxu0 %v1805
        %1851 = vmatprep.subr.mxu0 0.0
        %1852 = vmatpush2.msra.mxu0 0.0
        %1853 = vmatprep.subr.mxu0 0.0
        %1854 = vmatpush2.msra.mxu0 0.0
        %1855 = vmatprep.subr.mxu0 0.0
        %1856 = vmatpush2.msra.mxu0 0.0
        %1857 = vmatprep.subr.mxu0 0.0
        %1858 = vmatpush2.msra.mxu0 0.0
        %1859 = vmatprep.subr.mxu0 0.0
        %1860 = vmatpush2.msra.mxu0 0.0
        %1861 = vmatprep.subr.mxu0 0.0
        %1862 = vmatpush2.msra.mxu0 0.0
        %1863 = vmatprep.subr.mxu0 0.0
        %1864 = vmatpush2.msra.mxu0 0.0
        %1865 = vmatprep.subr.mxu0 0.0
        %1866 = vmatpush2.msra.mxu0 0.0
        %1867 = vmatprep.subr.mxu0 0.0
        %1868 = vmatpush2.msra.mxu0 0.0
        %1869 = vmatprep.subr.mxu0 0.0
        %1870 = vmatpush2.msra.mxu0 0.0
        %1871 = vmatprep.subr.mxu0 0.0
        %1872 = vmatpush2.msra.mxu0 0.0
        %1873 = vmatprep.subr.mxu0 0.0
        %1874 = vmatpush2.msra.mxu0 0.0
        %1875 = vmatprep.subr.mxu0 0.0
        %1876 = vmatpush2.msra.mxu0 0.0
        %1877 = vmatprep.subr.mxu0 0.0
        %1878 = vmatpush2.msra.mxu0 0.0
        %1879 = vmatprep.subr.mxu0 0.0
        %1880 = vmatpush2.msra.mxu0 0.0
        %1881 = vmatprep.subr.mxu0 0.0
        %1882 = vmatpush2.msra.mxu0 0.0
        %1883 = vmatprep.mubr.f32.mxu0 0.0
        %1884 = vmatmul.mubr.f32.gmra.mxu0 %v1817
        %v1885 = vpop.f32.mrf.mxu0
        %v1886 = vadd.f32 %v1814, %v1885
        %v1887 = vpop.f32.mrf.mxu0
        %1888 = vdwg.mxu0
        %1889 = vst.msk [vmem:[%s449] sm:$0xff] %vm457, %v1886
        %s1890 = sand.u32 %s221, 1
        %s1891 = scalar_lea.sflag [#allocation4], %s1890
        %s1892 = sand.u32 %s221, 1
        %s1893 = smul.addr %s1892, 8
        %s1894 = scalar_lea.vmem [#allocation14], %s1893
        // Predicated region
        $region81: #{tpu_custom_call.1} parent=51 // pred_check
          %p1895 = pneg %p231
        $region82: #{tpu_custom_call.1} parent=51 // pred_check_branch
          %1897 = sbr.rel (%p1895) target = $region84
        $region83: #{tpu_custom_call.1} parent=51 // pred_region
          %s1899 = ssub.s32 128, 128
          %1900 = vsyncadd %s1891, %s1899
          %s1901 = smul.addr %s30, 128
          %s1902 = scalar_lea.hbm %s8, %s1901
          %s1904 = sshll.u32 %s1894, 4
          %s1905 = int_to_ptr.vmem [resolvable:$true] %s1904
          %1907 = dma.vmem_to_hbm [thread:$0]  %s1905, 128, %s1902, %s1891
        $region84: #{tpu_custom_call.1} parent=51 // pred_fallthru
          _
      $region52: #{tpu_custom_call.1} parent=5 // pred_fallthru
        _
      %p1908 = scmp.le.s32.totalorder 2, %s25
      // Predicated region
      $region85: #{tpu_custom_call.1} parent=5 // pred_check
        %p1909 = pneg %p1908
      $region86: #{tpu_custom_call.1} parent=5 // pred_check_branch
        %1911 = sbr.rel (%p1909) target = $region88
      $region87: #{tpu_custom_call.1} parent=5 // pred_region
        %s1912 = ssub.s32 %s25, 2
        // Predicated region
        $region89: #{tpu_custom_call.1} parent=87 // pred_check
          %p1913 = pneg %p237
        $region90: #{tpu_custom_call.1} parent=87 // pred_check_branch
          %1915 = sbr.rel (%p1913) target = $region92
        $region91: #{tpu_custom_call.1} parent=87 // pred_region
          %s1916 = sand.u32 %s222, 1
          %s1917 = scalar_lea.sflag [#allocation4], %s1916
          %s1918 = sand.u32 %s222, 1
          %s1919 = smul.addr %s1918, 8
          %s1920 = scalar_lea.vmem [#allocation14], %s1919
          %1921 = dma.done %s1917, 128
        $region92: #{tpu_custom_call.1} parent=87 // pred_fallthru
          _
      $region88: #{tpu_custom_call.1} parent=5 // pred_fallthru
        _
    $region6: #{tpu_custom_call.1} parent=1 // loop_footer
      %s29 = sadd.s32 1, %s25
    $region7: #{tpu_custom_call.1} parent=1 // loop_footer_branch
      %24 = sbr.rel target = $region3
    $region8: #{tpu_custom_call.1} parent=1 // loop_exit
      _
    %1922 = vsyncpa [#allocation3], 1
    %s1923 = scalar_lea.sflag [#allocation3], 1
    %1924 = vsyncpa %s1923, 1
    %1925 = vsyncpa [#allocation6], 1
    %s1926 = scalar_lea.sflag [#allocation6], 1
    %1927 = vsyncpa %s1926, 1
    %1928 = vsyncpa [#allocation9], 1
    %1929 = vsyncpa [#allocation12], 1
    %1930 = vsyncpa [#allocation4], 1
    %s1931 = scalar_lea.sflag [#allocation4], 1
    %1932 = vsyncpa %s1931, 1

</llo_original>
